<compile_context>
chip_gen: v6e
topology: v6e:2x2x1
jax: 0.10.0
libtpu: 0.0.40
codegen_flags: <defaults>
</compile_context>

<pallas_src>
import functools

import jax
import jax.numpy as jnp
from jax.experimental import pallas as pl
from jax.experimental.pallas import tpu as pltpu


LANE = 128     # feature (lane) granularity
SUBLANE = 8    # f32 batch (sublane) granularity


def _round_up(v: int, m: int) -> int:
    return ((v + m - 1) // m) * m


def _vmem_capacity_bytes() -> int:
    """Per-TensorCore VMEM capacity (128 MiB on v5e/v6e, 64 MiB on v7x)."""
    try:
        return int(pltpu.get_tpu_info().vmem_capacity_bytes)
    except Exception:
        return 128 << 20


# ------------------------------ fused kernel ------------------------------

def _densenet_kernel(*refs, depth: int, n_in_pad: int, width_pad: int,
                     approx_recip: bool):
    """Fused DenseNet forward over one (TB, K_total_pad) activation scratch.

    refs = (x_ref,
            w0, b0, ..., w_{depth-2}, b_{depth-2},   # mid layers
            w_out, b_out,                            # output layer
            o_ref,                                   # output block
            acc_ref)                                 # VMEM scratch (concat buf)
    """
    x_ref = refs[0]
    mid_refs = [(refs[1 + 2 * i], refs[2 + 2 * i]) for i in range(depth - 1)]
    w_out_ref = refs[2 * depth - 1]
    b_out_ref = refs[2 * depth]
    o_ref = refs[2 * depth + 1]
    acc_ref = refs[2 * depth + 2]

    # Seed the in-VMEM "concatenation" buffer with the (padded) input block.
    # Layer 0 consumes x_blk directly so its MXU push does not wait on this
    # VMEM store.
    x_blk = x_ref[...]
    acc_ref[:, :n_in_pad] = x_blk

    # NOTE: padded batch rows pick up bias + SiLU(bias) != 0 inside acc.  This
    # is harmless because matmul rows are independent and the extra rows are
    # sliced off by the wrapper — do NOT add a batch-axis reduction here
    # without masking them.
    k = n_in_pad
    for i, (w_ref, b_ref) in enumerate(mid_refs):
        lhs = x_blk if i == 0 else acc_ref[:, :k]      # static 128-aligned K
        z = jnp.dot(lhs, w_ref[...], preferred_element_type=jnp.float32)
        z = z + b_ref[...]                              # f32 bias broadcast
        # SiLU(z) = z * sigmoid(z) = z / (1 + exp(-z)); math kept in f32
        # (v5e has no bf16 VPU/EUP).  reciprocal -> EUP slot.
        y = z * pl.reciprocal(1.0 + jnp.exp(-z), approx=approx_recip)
        acc_ref[:, k:k + width_pad] = y.astype(acc_ref.dtype)
        k += width_pad

    # Final linear over the full concatenated activation.
    z = jnp.dot(acc_ref[...], w_out_ref[...], preferred_element_type=jnp.float32)
    o_ref[...] = (z + b_out_ref[...]).astype(o_ref.dtype)


# --------------------------- parameter handling ---------------------------

def init_densenet_params(key, n_in: int, n_out: int, width: int, depth: int):
    """Unpadded f32 params mirroring torch.nn.Linear default init.

    Weights are stored pre-transposed as (fan_in, fan_out)."""
    assert depth >= 2
    mid = []
    for i in range(depth - 1):
        fan_in = n_in + i * width
        key, kw, kb = jax.random.split(key, 3)
        bound = 1.0 / (fan_in ** 0.5)
        w = jax.random.uniform(kw, (fan_in, width), jnp.float32, -bound, bound)
        b = jax.random.uniform(kb, (1, width), jnp.float32, -bound, bound)
        mid.append((w, b))
    fan_in = n_in + (depth - 1) * width
    key, kw, kb = jax.random.split(key, 3)
    bound = 1.0 / (fan_in ** 0.5)
    w = jax.random.uniform(kw, (fan_in, n_out), jnp.float32, -bound, bound)
    b = jax.random.uniform(kb, (1, n_out), jnp.float32, -bound, bound)
    return {"mid": mid, "out": (w, b)}


def pack_densenet_params(params, compute_dtype=jnp.float32):
    """Zero-pad weights to the lane-aligned layout of the fused activation
    buffer [x0 | y0 | y1 | ...] with padded segment sizes
    [n_in_pad, width_pad, ...].  Weights are cast to `compute_dtype`
    (bf16 production / f32 validation); biases stay f32."""
    n_in = params["mid"][0][0].shape[0]
    width = params["mid"][0][0].shape[1]
    n_out = params["out"][0].shape[1]
    depth = len(params["mid"]) + 1

    n_in_pad = _round_up(n_in, LANE)
    width_pad = _round_up(width, LANE)
    n_out_pad = _round_up(n_out, LANE)

    def pack_w(w, n_segs, out_pad):
        seg = [n_in] + [width] * (n_segs - 1)
        seg_pad = [n_in_pad] + [width_pad] * (n_segs - 1)
        out = jnp.zeros((sum(seg_pad), out_pad), compute_dtype)
        r = rp = 0
        for s, sp in zip(seg, seg_pad):
            out = out.at[rp:rp + s, :w.shape[1]].set(
                w[r:r + s].astype(compute_dtype))
            r += s
            rp += sp
        return out

    def pack_b(b, out_pad):
        return jnp.zeros((1, out_pad), jnp.float32).at[:, :b.shape[1]].set(
            b.astype(jnp.float32))

    mid = [(pack_w(w, i + 1, width_pad), pack_b(b, width_pad))
           for i, (w, b) in enumerate(params["mid"])]
    w_out, b_out = params["out"]
    out = (pack_w(w_out, depth, n_out_pad), pack_b(b_out, n_out_pad))

    return dict(mid=mid, out=out, depth=depth,
                n_in=n_in, width=width, n_out=n_out,
                n_in_pad=n_in_pad, width_pad=width_pad, n_out_pad=n_out_pad,
                compute_dtype=jnp.dtype(compute_dtype))


# ------------------------------ forward pass ------------------------------

def densenet_forward(packed, x: jax.Array, *, approx_recip: bool = True):
    """Fused Pallas DenseNet forward. x: (batch, n_in) -> (batch, n_out) f32."""
    batch, n_in = x.shape
    assert n_in == packed["n_in"]
    depth = packed["depth"]
    n_in_pad = packed["n_in_pad"]
    width_pad = packed["width_pad"]
    n_out_pad = packed["n_out_pad"]
    k_total_pad = n_in_pad + (depth - 1) * width_pad
    compute_dtype = packed["compute_dtype"]
    c_itemsize = compute_dtype.itemsize

    flat_weights = []
    for (w, b) in packed["mid"]:
        flat_weights += [w, b]
    flat_weights += list(packed["out"])
    weight_bytes = sum(int(a.size) * a.dtype.itemsize for a in flat_weights)

    # --- VMEM budget (per TensorCore; the "parallel" batch axis duplicates
    # resident weights onto both TCs on v7x, so per-core capacity binds). ---
    cap = _vmem_capacity_bytes()
    budget = cap - max(cap // 8, 8 << 20)     # headroom for compiler scratch

    def vmem_needed(tb):
        io = 2 * tb * (n_in_pad * c_itemsize + n_out_pad * 4)   # x/out, 2-deep
        scratch = tb * k_total_pad * c_itemsize                 # acc buffer
        return weight_bytes + io + scratch                      # weights 1-deep

    def fits(tb):
        return vmem_needed(tb) <= budget

    # --- batch tiling: largest multiple-of-8 tile (<=256) dividing
    # round_up(batch, 8) that fits VMEM -> no extra padded rows; if only tiny
    # divisors exist for a large batch, prefer tb=128 with padding so the
    # ~0.35 us per-grid-step overhead does not dominate. ---
    b8 = _round_up(batch, SUBLANE)
    tb = SUBLANE
    for t in range(SUBLANE, min(b8, 256) + 1, SUBLANE):
        if b8 % t == 0 and fits(t):
            tb = t
    b_pad = b8
    if tb < 64 and b8 > 128 and fits(128):
        tb, b_pad = 128, _round_up(b8, 128)

    x_pad = jnp.zeros((b_pad, n_in_pad), compute_dtype)
    x_pad = x_pad.at[:batch, :n_in].set(x.astype(compute_dtype))
    grid = (b_pad // tb,)

    flat_inputs = [x_pad] + flat_weights

    def build_specs(weight_pipeline_mode):
        wkw = ({} if weight_pipeline_mode is None
               else dict(pipeline_mode=weight_pipeline_mode))
        # x/out tile over batch (default 2-deep pipelining for DMA overlap);
        # grid-invariant weights/biases stay VMEM resident, single-buffered.
        in_specs = [pl.BlockSpec((tb, n_in_pad), lambda i: (i, 0))]
        for arr in flat_weights:
            in_specs.append(pl.BlockSpec(arr.shape, lambda i: (0, 0), **wkw))
        return in_specs

    out_specs = pl.BlockSpec((tb, n_out_pad), lambda i: (i, 0))

    # Cost estimate (padded compute) + VMEM limit from the actual working set.
    flops = 0
    for i in range(depth - 1):
        flops += 2 * b_pad * (n_in_pad + i * width_pad) * width_pad
    flops += 2 * b_pad * k_total_pad * n_out_pad
    transcendentals = b_pad * width_pad * (depth - 1)
    bytes_accessed = weight_bytes + int(x_pad.size) * c_itemsize \
        + b_pad * n_out_pad * 4
    needed = vmem_needed(tb)
    vmem_limit = int(min(budget, max(needed + (4 << 20), 16 << 20)))

    kernel = functools.partial(_densenet_kernel, depth=depth,
                               n_in_pad=n_in_pad, width_pad=width_pad,
                               approx_recip=approx_recip)

    def call(weight_pipeline_mode):
        return pl.pallas_call(
            kernel,
            out_shape=jax.ShapeDtypeStruct((b_pad, n_out_pad), jnp.float32),
            grid=grid,
            in_specs=build_specs(weight_pipeline_mode),
            out_specs=out_specs,
            scratch_shapes=[pltpu.VMEM((tb, k_total_pad), compute_dtype)],
            compiler_params=pltpu.CompilerParams(
                dimension_semantics=("parallel",),
                vmem_limit_bytes=vmem_limit),
            cost_estimate=pl.CostEstimate(
                flops=int(flops),
                transcendentals=int(transcendentals),
                bytes_accessed=int(bytes_accessed)),
        )(*flat_inputs)

    try:
        # Single-buffer the grid-invariant weights (halves their VMEM).
        out_padded = call(pl.Buffered(1))
    except Exception:
        # Fallback for Pallas versions that reject buffer_count=1.
        out_padded = call(None)

    return out_padded[:batch, :packed["n_out"]]


# --------------------------- reference (pure JAX) --------------------------

def densenet_reference(params, x: jax.Array) -> jax.Array:
    for (w, b) in params["mid"]:
        z = x @ w + b
        x = jnp.concatenate([x, z * jax.nn.sigmoid(z)], axis=1)
    w_out, b_out = params["out"]
    return x @ w_out + b_out


# ---------------------------------- main ----------------------------------

if __name__ == "__main__":
    # Small, forward-consistent shapes: batch=2, n_in=8, width=32, depth=4, n_out=5.
    n_in, n_out, width, depth = 8, 5, 32, 4
    batch = 2

    key = jax.random.PRNGKey(0)
    key_params, key_x = jax.random.split(key)
    params = init_densenet_params(key_params, n_in, n_out, width, depth)
    x = jax.random.normal(key_x, (batch, n_in), jnp.float32)
    ref = densenet_reference(params, x)

    # f32 validation path (exact reciprocal, strict tolerance).
    packed_f32 = pack_densenet_params(params, compute_dtype=jnp.float32)
    out_f32 = jax.block_until_ready(
        densenet_forward(packed_f32, x, approx_recip=False))
    assert out_f32.shape == (batch, n_out), out_f32.shape
    assert jnp.allclose(out_f32, ref, atol=1e-5, rtol=1e-5), "f32 mismatch"

    # bf16 production path (f32 accumulation, EUP approx reciprocal).
    packed_bf16 = pack_densenet_params(params, compute_dtype=jnp.bfloat16)
    out_bf16 = jax.block_until_ready(densenet_forward(packed_bf16, x))
    assert out_bf16.shape == (batch, n_out), out_bf16.shape
    assert jnp.allclose(out_bf16, ref, atol=5e-2, rtol=5e-2), "bf16 mismatch"

    print("KERNEL_OK")
</pallas_src>

<mosaic_0001>
module attributes {stable_mosaic.version = 11 : i64} {
  func.func @_densenet_kernel(%arg0: i32, %arg1: memref<8x128xf32, #tpu.memory_space<vmem>>, %arg2: memref<128x128xf32, #tpu.memory_space<vmem>>, %arg3: memref<1x128xf32, #tpu.memory_space<vmem>>, %arg4: memref<256x128xf32, #tpu.memory_space<vmem>>, %arg5: memref<1x128xf32, #tpu.memory_space<vmem>>, %arg6: memref<384x128xf32, #tpu.memory_space<vmem>>, %arg7: memref<1x128xf32, #tpu.memory_space<vmem>>, %arg8: memref<512x128xf32, #tpu.memory_space<vmem>>, %arg9: memref<1x128xf32, #tpu.memory_space<vmem>>, %arg10: memref<8x128xf32, #tpu.memory_space<vmem>>, %arg11: memref<8x512xf32, #tpu.memory_space<vmem>>) attributes {dimension_semantics = [#tpu.dimension_semantics<parallel>], iteration_bounds = array<i64: 1>, scalar_prefetch = 0 : i64, scratch_operands = 1 : i64, tpu.core_type = #tpu.core_type<tc>, window_params = [{transform_indices = @transform_0, window_bounds = array<i64: 8, 128>}, {pipeline_mode = #tpu.pipeline_mode<synchronous>, transform_indices = @transform_1, window_bounds = array<i64: 128, 128>}, {pipeline_mode = #tpu.pipeline_mode<synchronous>, transform_indices = @transform_2, window_bounds = array<i64: 1, 128>}, {pipeline_mode = #tpu.pipeline_mode<synchronous>, transform_indices = @transform_3, window_bounds = array<i64: 256, 128>}, {pipeline_mode = #tpu.pipeline_mode<synchronous>, transform_indices = @transform_4, window_bounds = array<i64: 1, 128>}, {pipeline_mode = #tpu.pipeline_mode<synchronous>, transform_indices = @transform_5, window_bounds = array<i64: 384, 128>}, {pipeline_mode = #tpu.pipeline_mode<synchronous>, transform_indices = @transform_6, window_bounds = array<i64: 1, 128>}, {pipeline_mode = #tpu.pipeline_mode<synchronous>, transform_indices = @transform_7, window_bounds = array<i64: 512, 128>}, {pipeline_mode = #tpu.pipeline_mode<synchronous>, transform_indices = @transform_8, window_bounds = array<i64: 1, 128>}, {transform_indices = @transform_9, window_bounds = array<i64: 8, 128>}]} {
    %c0 = arith.constant 0 : index
    %c0_0 = arith.constant 0 : index
    %0 = vector.load %arg1[%c0, %c0_0] : memref<8x128xf32, #tpu.memory_space<vmem>>, vector<8x128xf32>
    %c0_1 = arith.constant 0 : index
    %c0_2 = arith.constant 0 : index
    %1 = vector.load %arg11[%c0_1, %c0_2] : memref<8x512xf32, #tpu.memory_space<vmem>>, vector<8x128xf32>
    tpu.vector_store %arg11[%c0_1, %c0_2], %0 {strides = array<i32>} : memref<8x512xf32, #tpu.memory_space<vmem>>, vector<8x128xf32>,
    %c0_3 = arith.constant 0 : index
    %c0_4 = arith.constant 0 : index
    %2 = vector.load %arg2[%c0_3, %c0_4] : memref<128x128xf32, #tpu.memory_space<vmem>>, vector<128x128xf32>
    %cst = arith.constant dense<0.000000e+00> : vector<8x128xf32>
    %3 = tpu.matmul %0, %2, %cst {dimension_numbers = #tpu.dot_dimension_numbers<[1], [0], [0], [1], [0, 0, 1, 1], [], []>} : vector<8x128xf32>, vector<128x128xf32>, vector<8x128xf32> -> vector<8x128xf32>
    %c0_5 = arith.constant 0 : index
    %c0_6 = arith.constant 0 : index
    %4 = vector.load %arg3[%c0_5, %c0_6] : memref<1x128xf32, #tpu.memory_space<vmem>>, vector<1x128xf32>
    %5 = vector.broadcast %4 : vector<1x128xf32> to vector<8x128xf32>
    %6 = arith.addf %3, %5 : vector<8x128xf32>
    %cst_7 = arith.constant 0.000000e+00 : f32
    %7 = vector.broadcast %cst_7 : f32 to vector<8x128xf32>
    %8 = arith.subf %7, %6 : vector<8x128xf32>
    %9 = math.exp %8 : vector<8x128xf32>
    %cst_8 = arith.constant 1.000000e+00 : f32
    %10 = vector.broadcast %cst_8 : f32 to vector<8x128xf32>
    %11 = arith.addf %10, %9 : vector<8x128xf32>
    %12 = tpu.reciprocal %11 : vector<8x128xf32> -> vector<8x128xf32>
    %13 = arith.mulf %6, %12 : vector<8x128xf32>
    %c0_9 = arith.constant 0 : index
    %c128 = arith.constant 128 : index
    %14 = vector.load %arg11[%c0_9, %c128] : memref<8x512xf32, #tpu.memory_space<vmem>>, vector<8x128xf32>
    tpu.vector_store %arg11[%c0_9, %c128], %13 {strides = array<i32>} : memref<8x512xf32, #tpu.memory_space<vmem>>, vector<8x128xf32>,
    %c0_10 = arith.constant 0 : index
    %c0_11 = arith.constant 0 : index
    %15 = vector.load %arg11[%c0_10, %c0_11] : memref<8x512xf32, #tpu.memory_space<vmem>>, vector<8x256xf32>
    %c0_12 = arith.constant 0 : index
    %c0_13 = arith.constant 0 : index
    %16 = vector.load %arg4[%c0_12, %c0_13] : memref<256x128xf32, #tpu.memory_space<vmem>>, vector<256x128xf32>
    %cst_14 = arith.constant dense<0.000000e+00> : vector<8x128xf32>
    %17 = tpu.matmul %15, %16, %cst_14 {dimension_numbers = #tpu.dot_dimension_numbers<[1], [0], [0], [1], [0, 0, 1, 1], [], []>} : vector<8x256xf32>, vector<256x128xf32>, vector<8x128xf32> -> vector<8x128xf32>
    %c0_15 = arith.constant 0 : index
    %c0_16 = arith.constant 0 : index
    %18 = vector.load %arg5[%c0_15, %c0_16] : memref<1x128xf32, #tpu.memory_space<vmem>>, vector<1x128xf32>
    %19 = vector.broadcast %18 : vector<1x128xf32> to vector<8x128xf32>
    %20 = arith.addf %17, %19 : vector<8x128xf32>
    %cst_17 = arith.constant 0.000000e+00 : f32
    %21 = vector.broadcast %cst_17 : f32 to vector<8x128xf32>
    %22 = arith.subf %21, %20 : vector<8x128xf32>
    %23 = math.exp %22 : vector<8x128xf32>
    %cst_18 = arith.constant 1.000000e+00 : f32
    %24 = vector.broadcast %cst_18 : f32 to vector<8x128xf32>
    %25 = arith.addf %24, %23 : vector<8x128xf32>
    %26 = tpu.reciprocal %25 : vector<8x128xf32> -> vector<8x128xf32>
    %27 = arith.mulf %20, %26 : vector<8x128xf32>
    %c0_19 = arith.constant 0 : index
    %c256 = arith.constant 256 : index
    %28 = vector.load %arg11[%c0_19, %c256] : memref<8x512xf32, #tpu.memory_space<vmem>>, vector<8x128xf32>
    tpu.vector_store %arg11[%c0_19, %c256], %27 {strides = array<i32>} : memref<8x512xf32, #tpu.memory_space<vmem>>, vector<8x128xf32>,
    %c0_20 = arith.constant 0 : index
    %c0_21 = arith.constant 0 : index
    %29 = vector.load %arg11[%c0_20, %c0_21] : memref<8x512xf32, #tpu.memory_space<vmem>>, vector<8x384xf32>
    %c0_22 = arith.constant 0 : index
    %c0_23 = arith.constant 0 : index
    %30 = vector.load %arg6[%c0_22, %c0_23] : memref<384x128xf32, #tpu.memory_space<vmem>>, vector<384x128xf32>
    %cst_24 = arith.constant dense<0.000000e+00> : vector<8x128xf32>
    %31 = tpu.matmul %29, %30, %cst_24 {dimension_numbers = #tpu.dot_dimension_numbers<[1], [0], [0], [1], [0, 0, 1, 1], [], []>} : vector<8x384xf32>, vector<384x128xf32>, vector<8x128xf32> -> vector<8x128xf32>
    %c0_25 = arith.constant 0 : index
    %c0_26 = arith.constant 0 : index
    %32 = vector.load %arg7[%c0_25, %c0_26] : memref<1x128xf32, #tpu.memory_space<vmem>>, vector<1x128xf32>
    %33 = vector.broadcast %32 : vector<1x128xf32> to vector<8x128xf32>
    %34 = arith.addf %31, %33 : vector<8x128xf32>
    %cst_27 = arith.constant 0.000000e+00 : f32
    %35 = vector.broadcast %cst_27 : f32 to vector<8x128xf32>
    %36 = arith.subf %35, %34 : vector<8x128xf32>
    %37 = math.exp %36 : vector<8x128xf32>
    %cst_28 = arith.constant 1.000000e+00 : f32
    %38 = vector.broadcast %cst_28 : f32 to vector<8x128xf32>
    %39 = arith.addf %38, %37 : vector<8x128xf32>
    %40 = tpu.reciprocal %39 : vector<8x128xf32> -> vector<8x128xf32>
    %41 = arith.mulf %34, %40 : vector<8x128xf32>
    %c0_29 = arith.constant 0 : index
    %c384 = arith.constant 384 : index
    %42 = vector.load %arg11[%c0_29, %c384] : memref<8x512xf32, #tpu.memory_space<vmem>>, vector<8x128xf32>
    tpu.vector_store %arg11[%c0_29, %c384], %41 {strides = array<i32>} : memref<8x512xf32, #tpu.memory_space<vmem>>, vector<8x128xf32>,
    %c0_30 = arith.constant 0 : index
    %c0_31 = arith.constant 0 : index
    %43 = vector.load %arg11[%c0_30, %c0_31] : memref<8x512xf32, #tpu.memory_space<vmem>>, vector<8x512xf32>
    %c0_32 = arith.constant 0 : index
    %c0_33 = arith.constant 0 : index
    %44 = vector.load %arg8[%c0_32, %c0_33] : memref<512x128xf32, #tpu.memory_space<vmem>>, vector<512x128xf32>
    %cst_34 = arith.constant dense<0.000000e+00> : vector<8x128xf32>
    %45 = tpu.matmul %43, %44, %cst_34 {dimension_numbers = #tpu.dot_dimension_numbers<[1], [0], [0], [1], [0, 0, 1, 1], [], []>} : vector<8x512xf32>, vector<512x128xf32>, vector<8x128xf32> -> vector<8x128xf32>
    %c0_35 = arith.constant 0 : index
    %c0_36 = arith.constant 0 : index
    %46 = vector.load %arg9[%c0_35, %c0_36] : memref<1x128xf32, #tpu.memory_space<vmem>>, vector<1x128xf32>
    %47 = vector.broadcast %46 : vector<1x128xf32> to vector<8x128xf32>
    %48 = arith.addf %45, %47 : vector<8x128xf32>
    %c0_37 = arith.constant 0 : index
    %c0_38 = arith.constant 0 : index
    %49 = vector.load %arg10[%c0_37, %c0_38] : memref<8x128xf32, #tpu.memory_space<vmem>>, vector<8x128xf32>
    tpu.vector_store %arg10[%c0_37, %c0_38], %48 {strides = array<i32>} : memref<8x128xf32, #tpu.memory_space<vmem>>, vector<8x128xf32>,
    return
  }
  func.func @transform_0(%arg0: i32) -> (i32, i32) {
    %c0_i32 = arith.constant 0 : i32
    %c0_i32_0 = arith.constant 0 : i32
    return %arg0, %c0_i32 : i32, i32
  }
  func.func @transform_1(%arg0: i32) -> (i32, i32) {
    %c0_i32 = arith.constant 0 : i32
    %c0_i32_0 = arith.constant 0 : i32
    %c0_i32_1 = arith.constant 0 : i32
    return %c0_i32, %c0_i32_0 : i32, i32
  }
  func.func @transform_2(%arg0: i32) -> (i32, i32) {
    %c0_i32 = arith.constant 0 : i32
    %c0_i32_0 = arith.constant 0 : i32
    %c0_i32_1 = arith.constant 0 : i32
    return %c0_i32, %c0_i32_0 : i32, i32
  }
  func.func @transform_3(%arg0: i32) -> (i32, i32) {
    %c0_i32 = arith.constant 0 : i32
    %c0_i32_0 = arith.constant 0 : i32
    %c0_i32_1 = arith.constant 0 : i32
    return %c0_i32, %c0_i32_0 : i32, i32
  }
  func.func @transform_4(%arg0: i32) -> (i32, i32) {
    %c0_i32 = arith.constant 0 : i32
    %c0_i32_0 = arith.constant 0 : i32
    %c0_i32_1 = arith.constant 0 : i32
    return %c0_i32, %c0_i32_0 : i32, i32
  }
  func.func @transform_5(%arg0: i32) -> (i32, i32) {
    %c0_i32 = arith.constant 0 : i32
    %c0_i32_0 = arith.constant 0 : i32
    %c0_i32_1 = arith.constant 0 : i32
    return %c0_i32, %c0_i32_0 : i32, i32
  }
  func.func @transform_6(%arg0: i32) -> (i32, i32) {
    %c0_i32 = arith.constant 0 : i32
    %c0_i32_0 = arith.constant 0 : i32
    %c0_i32_1 = arith.constant 0 : i32
    return %c0_i32, %c0_i32_0 : i32, i32
  }
  func.func @transform_7(%arg0: i32) -> (i32, i32) {
    %c0_i32 = arith.constant 0 : i32
    %c0_i32_0 = arith.constant 0 : i32
    %c0_i32_1 = arith.constant 0 : i32
    return %c0_i32, %c0_i32_0 : i32, i32
  }
  func.func @transform_8(%arg0: i32) -> (i32, i32) {
    %c0_i32 = arith.constant 0 : i32
    %c0_i32_0 = arith.constant 0 : i32
    %c0_i32_1 = arith.constant 0 : i32
    return %c0_i32, %c0_i32_0 : i32, i32
  }
  func.func @transform_9(%arg0: i32) -> (i32, i32) {
    %c0_i32 = arith.constant 0 : i32
    %c0_i32_0 = arith.constant 0 : i32
    return %arg0, %c0_i32 : i32, i32
  }
}

module attributes {stable_mosaic.version = 11 : i64} {
  func.func @_densenet_kernel(%arg0: i32, %arg1: memref<8x128xf32, #tpu.memory_space<vmem>>, %arg2: memref<128x128xf32, #tpu.memory_space<vmem>>, %arg3: memref<1x128xf32, #tpu.memory_space<vmem>>, %arg4: memref<256x128xf32, #tpu.memory_space<vmem>>, %arg5: memref<1x128xf32, #tpu.memory_space<vmem>>, %arg6: memref<384x128xf32, #tpu.memory_space<vmem>>, %arg7: memref<1x128xf32, #tpu.memory_space<vmem>>, %arg8: memref<512x128xf32, #tpu.memory_space<vmem>>, %arg9: memref<1x128xf32, #tpu.memory_space<vmem>>, %arg10: memref<8x128xf32, #tpu.memory_space<vmem>>, %arg11: memref<8x512xf32, #tpu.memory_space<vmem>>) attributes {dimension_semantics = [#tpu.dimension_semantics<parallel>], iteration_bounds = array<i64: 1>, scalar_prefetch = 0 : i64, scratch_operands = 1 : i64, tpu.core_type = #tpu.core_type<tc>, window_params = [{transform_indices = @transform_0, window_bounds = array<i64: 8, 128>}, {pipeline_mode = #tpu.pipeline_mode<synchronous>, transform_indices = @transform_1, window_bounds = array<i64: 128, 128>}, {pipeline_mode = #tpu.pipeline_mode<synchronous>, transform_indices = @transform_2, window_bounds = array<i64: 1, 128>}, {pipeline_mode = #tpu.pipeline_mode<synchronous>, transform_indices = @transform_3, window_bounds = array<i64: 256, 128>}, {pipeline_mode = #tpu.pipeline_mode<synchronous>, transform_indices = @transform_4, window_bounds = array<i64: 1, 128>}, {pipeline_mode = #tpu.pipeline_mode<synchronous>, transform_indices = @transform_5, window_bounds = array<i64: 384, 128>}, {pipeline_mode = #tpu.pipeline_mode<synchronous>, transform_indices = @transform_6, window_bounds = array<i64: 1, 128>}, {pipeline_mode = #tpu.pipeline_mode<synchronous>, transform_indices = @transform_7, window_bounds = array<i64: 512, 128>}, {pipeline_mode = #tpu.pipeline_mode<synchronous>, transform_indices = @transform_8, window_bounds = array<i64: 1, 128>}, {transform_indices = @transform_9, window_bounds = array<i64: 8, 128>}]} {
    %c0 = arith.constant 0 : index
    %c0_0 = arith.constant 0 : index
    %0 = vector.load %arg1[%c0, %c0_0] : memref<8x128xf32, #tpu.memory_space<vmem>>, vector<8x128xf32>
    %c0_1 = arith.constant 0 : index
    %c0_2 = arith.constant 0 : index
    %1 = vector.load %arg11[%c0_1, %c0_2] : memref<8x512xf32, #tpu.memory_space<vmem>>, vector<8x128xf32>
    tpu.vector_store %arg11[%c0_1, %c0_2], %0 {strides = array<i32>} : memref<8x512xf32, #tpu.memory_space<vmem>>, vector<8x128xf32>,
    %c0_3 = arith.constant 0 : index
    %c0_4 = arith.constant 0 : index
    %2 = vector.load %arg2[%c0_3, %c0_4] : memref<128x128xf32, #tpu.memory_space<vmem>>, vector<128x128xf32>
    %cst = arith.constant dense<0.000000e+00> : vector<8x128xf32>
    %3 = tpu.matmul %0, %2, %cst {dimension_numbers = #tpu.dot_dimension_numbers<[1], [0], [0], [1], [0, 0, 1, 1], [], []>} : vector<8x128xf32>, vector<128x128xf32>, vector<8x128xf32> -> vector<8x128xf32>
    %c0_5 = arith.constant 0 : index
    %c0_6 = arith.constant 0 : index
    %4 = vector.load %arg3[%c0_5, %c0_6] : memref<1x128xf32, #tpu.memory_space<vmem>>, vector<1x128xf32>
    %5 = vector.broadcast %4 : vector<1x128xf32> to vector<8x128xf32>
    %6 = arith.addf %3, %5 : vector<8x128xf32>
    %cst_7 = arith.constant 0.000000e+00 : f32
    %7 = vector.broadcast %cst_7 : f32 to vector<8x128xf32>
    %8 = arith.subf %7, %6 : vector<8x128xf32>
    %9 = math.exp %8 : vector<8x128xf32>
    %cst_8 = arith.constant 1.000000e+00 : f32
    %10 = vector.broadcast %cst_8 : f32 to vector<8x128xf32>
    %11 = arith.addf %10, %9 : vector<8x128xf32>
    %12 = tpu.reciprocal %11 : vector<8x128xf32> -> vector<8x128xf32>
    %13 = arith.mulf %6, %12 : vector<8x128xf32>
    %c0_9 = arith.constant 0 : index
    %c128 = arith.constant 128 : index
    %14 = vector.load %arg11[%c0_9, %c128] : memref<8x512xf32, #tpu.memory_space<vmem>>, vector<8x128xf32>
    tpu.vector_store %arg11[%c0_9, %c128], %13 {strides = array<i32>} : memref<8x512xf32, #tpu.memory_space<vmem>>, vector<8x128xf32>,
    %c0_10 = arith.constant 0 : index
    %c0_11 = arith.constant 0 : index
    %15 = vector.load %arg11[%c0_10, %c0_11] : memref<8x512xf32, #tpu.memory_space<vmem>>, vector<8x256xf32>
    %c0_12 = arith.constant 0 : index
    %c0_13 = arith.constant 0 : index
    %16 = vector.load %arg4[%c0_12, %c0_13] : memref<256x128xf32, #tpu.memory_space<vmem>>, vector<256x128xf32>
    %cst_14 = arith.constant dense<0.000000e+00> : vector<8x128xf32>
    %17 = tpu.matmul %15, %16, %cst_14 {dimension_numbers = #tpu.dot_dimension_numbers<[1], [0], [0], [1], [0, 0, 1, 1], [], []>} : vector<8x256xf32>, vector<256x128xf32>, vector<8x128xf32> -> vector<8x128xf32>
    %c0_15 = arith.constant 0 : index
    %c0_16 = arith.constant 0 : index
    %18 = vector.load %arg5[%c0_15, %c0_16] : memref<1x128xf32, #tpu.memory_space<vmem>>, vector<1x128xf32>
    %19 = vector.broadcast %18 : vector<1x128xf32> to vector<8x128xf32>
    %20 = arith.addf %17, %19 : vector<8x128xf32>
    %cst_17 = arith.constant 0.000000e+00 : f32
    %21 = vector.broadcast %cst_17 : f32 to vector<8x128xf32>
    %22 = arith.subf %21, %20 : vector<8x128xf32>
    %23 = math.exp %22 : vector<8x128xf32>
    %cst_18 = arith.constant 1.000000e+00 : f32
    %24 = vector.broadcast %cst_18 : f32 to vector<8x128xf32>
    %25 = arith.addf %24, %23 : vector<8x128xf32>
    %26 = tpu.reciprocal %25 : vector<8x128xf32> -> vector<8x128xf32>
    %27 = arith.mulf %20, %26 : vector<8x128xf32>
    %c0_19 = arith.constant 0 : index
    %c256 = arith.constant 256 : index
    %28 = vector.load %arg11[%c0_19, %c256] : memref<8x512xf32, #tpu.memory_space<vmem>>, vector<8x128xf32>
    tpu.vector_store %arg11[%c0_19, %c256], %27 {strides = array<i32>} : memref<8x512xf32, #tpu.memory_space<vmem>>, vector<8x128xf32>,
    %c0_20 = arith.constant 0 : index
    %c0_21 = arith.constant 0 : index
    %29 = vector.load %arg11[%c0_20, %c0_21] : memref<8x512xf32, #tpu.memory_space<vmem>>, vector<8x384xf32>
    %c0_22 = arith.constant 0 : index
    %c0_23 = arith.constant 0 : index
    %30 = vector.load %arg6[%c0_22, %c0_23] : memref<384x128xf32, #tpu.memory_space<vmem>>, vector<384x128xf32>
    %cst_24 = arith.constant dense<0.000000e+00> : vector<8x128xf32>
    %31 = tpu.matmul %29, %30, %cst_24 {dimension_numbers = #tpu.dot_dimension_numbers<[1], [0], [0], [1], [0, 0, 1, 1], [], []>} : vector<8x384xf32>, vector<384x128xf32>, vector<8x128xf32> -> vector<8x128xf32>
    %c0_25 = arith.constant 0 : index
    %c0_26 = arith.constant 0 : index
    %32 = vector.load %arg7[%c0_25, %c0_26] : memref<1x128xf32, #tpu.memory_space<vmem>>, vector<1x128xf32>
    %33 = vector.broadcast %32 : vector<1x128xf32> to vector<8x128xf32>
    %34 = arith.addf %31, %33 : vector<8x128xf32>
    %cst_27 = arith.constant 0.000000e+00 : f32
    %35 = vector.broadcast %cst_27 : f32 to vector<8x128xf32>
    %36 = arith.subf %35, %34 : vector<8x128xf32>
    %37 = math.exp %36 : vector<8x128xf32>
    %cst_28 = arith.constant 1.000000e+00 : f32
    %38 = vector.broadcast %cst_28 : f32 to vector<8x128xf32>
    %39 = arith.addf %38, %37 : vector<8x128xf32>
    %40 = tpu.reciprocal %39 : vector<8x128xf32> -> vector<8x128xf32>
    %41 = arith.mulf %34, %40 : vector<8x128xf32>
    %c0_29 = arith.constant 0 : index
    %c384 = arith.constant 384 : index
    %42 = vector.load %arg11[%c0_29, %c384] : memref<8x512xf32, #tpu.memory_space<vmem>>, vector<8x128xf32>
    tpu.vector_store %arg11[%c0_29, %c384], %41 {strides = array<i32>} : memref<8x512xf32, #tpu.memory_space<vmem>>, vector<8x128xf32>,
    %c0_30 = arith.constant 0 : index
    %c0_31 = arith.constant 0 : index
    %43 = vector.load %arg11[%c0_30, %c0_31] : memref<8x512xf32, #tpu.memory_space<vmem>>, vector<8x512xf32>
    %c0_32 = arith.constant 0 : index
    %c0_33 = arith.constant 0 : index
    %44 = vector.load %arg8[%c0_32, %c0_33] : memref<512x128xf32, #tpu.memory_space<vmem>>, vector<512x128xf32>
    %cst_34 = arith.constant dense<0.000000e+00> : vector<8x128xf32>
    %45 = tpu.matmul %43, %44, %cst_34 {dimension_numbers = #tpu.dot_dimension_numbers<[1], [0], [0], [1], [0, 0, 1, 1], [], []>} : vector<8x512xf32>, vector<512x128xf32>, vector<8x128xf32> -> vector<8x128xf32>
    %c0_35 = arith.constant 0 : index
    %c0_36 = arith.constant 0 : index
    %46 = vector.load %arg9[%c0_35, %c0_36] : memref<1x128xf32, #tpu.memory_space<vmem>>, vector<1x128xf32>
    %47 = vector.broadcast %46 : vector<1x128xf32> to vector<8x128xf32>
    %48 = arith.addf %45, %47 : vector<8x128xf32>
    %c0_37 = arith.constant 0 : index
    %c0_38 = arith.constant 0 : index
    %49 = vector.load %arg10[%c0_37, %c0_38] : memref<8x128xf32, #tpu.memory_space<vmem>>, vector<8x128xf32>
    tpu.vector_store %arg10[%c0_37, %c0_38], %48 {strides = array<i32>} : memref<8x128xf32, #tpu.memory_space<vmem>>, vector<8x128xf32>,
    return
  }
  func.func @transform_0(%arg0: i32) -> (i32, i32) {
    %c0_i32 = arith.constant 0 : i32
    %c0_i32_0 = arith.constant 0 : i32
    return %arg0, %c0_i32 : i32, i32
  }
  func.func @transform_1(%arg0: i32) -> (i32, i32) {
    %c0_i32 = arith.constant 0 : i32
    %c0_i32_0 = arith.constant 0 : i32
    %c0_i32_1 = arith.constant 0 : i32
    return %c0_i32, %c0_i32_0 : i32, i32
  }
  func.func @transform_2(%arg0: i32) -> (i32, i32) {
    %c0_i32 = arith.constant 0 : i32
    %c0_i32_0 = arith.constant 0 : i32
    %c0_i32_1 = arith.constant 0 : i32
    return %c0_i32, %c0_i32_0 : i32, i32
  }
  func.func @transform_3(%arg0: i32) -> (i32, i32) {
    %c0_i32 = arith.constant 0 : i32
    %c0_i32_0 = arith.constant 0 : i32
    %c0_i32_1 = arith.constant 0 : i32
    return %c0_i32, %c0_i32_0 : i32, i32
  }
  func.func @transform_4(%arg0: i32) -> (i32, i32) {
    %c0_i32 = arith.constant 0 : i32
    %c0_i32_0 = arith.constant 0 : i32
    %c0_i32_1 = arith.constant 0 : i32
    return %c0_i32, %c0_i32_0 : i32, i32
  }
  func.func @transform_5(%arg0: i32) -> (i32, i32) {
    %c0_i32 = arith.constant 0 : i32
    %c0_i32_0 = arith.constant 0 : i32
    %c0_i32_1 = arith.constant 0 : i32
    return %c0_i32, %c0_i32_0 : i32, i32
  }
  func.func @transform_6(%arg0: i32) -> (i32, i32) {
    %c0_i32 = arith.constant 0 : i32
    %c0_i32_0 = arith.constant 0 : i32
    %c0_i32_1 = arith.constant 0 : i32
    return %c0_i32, %c0_i32_0 : i32, i32
  }
  func.func @transform_7(%arg0: i32) -> (i32, i32) {
    %c0_i32 = arith.constant 0 : i32
    %c0_i32_0 = arith.constant 0 : i32
    %c0_i32_1 = arith.constant 0 : i32
    return %c0_i32, %c0_i32_0 : i32, i32
  }
  func.func @transform_8(%arg0: i32) -> (i32, i32) {
    %c0_i32 = arith.constant 0 : i32
    %c0_i32_0 = arith.constant 0 : i32
    %c0_i32_1 = arith.constant 0 : i32
    return %c0_i32, %c0_i32_0 : i32, i32
  }
  func.func @transform_9(%arg0: i32) -> (i32, i32) {
    %c0_i32 = arith.constant 0 : i32
    %c0_i32_0 = arith.constant 0 : i32
    return %arg0, %c0_i32 : i32, i32
  }
}

</mosaic_0001>

<llo_original>
// kernel: tpu_custom_call.1
$region0: #{tpu_custom_call.1}
  #allocation0 [shape = 'u32[]', space=smem, size = 0x4, offset = 0x4, fixed_abs, tag = 'smem constant byte address 0x4 - core index']
  #allocation1 [shape = 'u32[144,128]{1,0:T(1,128)}', space=vmem, size = 0x12000, scoped, tag = 'internal scratch']
  #allocation2 [shape = 'f32[8,512]{1,0:T(8,128)}', space=vmem, size = 0x4000, scoped, tag = 'scratch operand']
  %s0 = inlined_call_operand.hbm [shape: f32[8,128], index: 0, kind: input, shape index: {}]
  %s1 = inlined_call_operand.hbm [shape: f32[128,128], index: 1, kind: input, shape index: {}]
  %s2 = inlined_call_operand.vmem [shape: f32[1,128], index: 2, kind: input, shape index: {}]
  %s3 = inlined_call_operand.hbm [shape: f32[256,128], index: 3, kind: input, shape index: {}]
  %s4 = inlined_call_operand.vmem [shape: f32[1,128], index: 4, kind: input, shape index: {}]
  %s5 = inlined_call_operand.hbm [shape: f32[384,128], index: 5, kind: input, shape index: {}]
  %s6 = inlined_call_operand.vmem [shape: f32[1,128], index: 6, kind: input, shape index: {}]
  %s7 = inlined_call_operand.hbm [shape: f32[512,128], index: 7, kind: input, shape index: {}]
  %s8 = inlined_call_operand.vmem [shape: f32[1,128], index: 8, kind: input, shape index: {}]
  %s9 = inlined_call_operand.hbm [shape: f32[8,128], index: 9, kind: output, shape index: {}]
  %s10 = sld [smem:[#allocation0]]
  $region66: #{tpu_custom_call.1} parent=0
    _
  %s12 = ssub.s32 1, %s10
  %s13 = scalar_select 0, %s12, %s10
  $region1: #{tpu_custom_call.1} parent=0
    #allocation3 [shape = 'u8[4096]{0}', space=vmem, size = 0x1000, scoped, tag = 'input window, operand 0, single buffered']
    #allocation4 [shape = 's32[1]{0}', space=sflag, size = 0x4, scoped, tag = 'scoped memory for tpu_custom_call.1']
    #allocation5 [shape = 's32[1]{0}', space=sflag, size = 0x4, scoped, tag = 'scoped memory for tpu_custom_call.1']
    #allocation6 [shape = 'u8[65536]{0}', space=vmem, size = 0x10000, scoped, tag = 'input window, operand 1, single buffered']
    #allocation7 [shape = 's32[1]{0}', space=sflag, size = 0x4, scoped, tag = 'scoped memory for tpu_custom_call.1']
    #allocation8 [shape = 'u8[131072]{0}', space=vmem, size = 0x20000, scoped, tag = 'input window, operand 3, single buffered']
    #allocation9 [shape = 'u8[196608]{0}', space=vmem, size = 0x30000, scoped, tag = 'input window, operand 5, single buffered']
    #allocation10 [shape = 's32[1]{0}', space=sflag, size = 0x4, scoped, tag = 'scoped memory for tpu_custom_call.1']
    #allocation11 [shape = 'u8[262144]{0}', space=vmem, size = 0x40000, scoped, tag = 'input window, operand 7, single buffered']
    #allocation12 [shape = 'u8[4096]{0}', space=vmem, size = 0x1000, scoped, tag = 'output window, operand 0, single buffered']
    %14 = vsyncpa [#allocation4], 0
    %15 = vsyncpa [#allocation7], 0
    %16 = vsyncpa [#allocation10], 0
    %17 = vsyncpa [#allocation5], 0
    // Predicated region
    $region2: #{tpu_custom_call.1} parent=1 // pred_check
      _
    $region3: #{tpu_custom_call.1} parent=1 // pred_check_branch
      %19 = sbr.rel (0) target = $region5
    $region4: #{tpu_custom_call.1} parent=1 // pred_region
      %s21 = ssub.s32 128, 128
      %22 = vsyncadd [#allocation4], %s21
      %s24 = sshll.u32 [#allocation3], 4
      %s25 = int_to_ptr.vmem [resolvable:$true] %s24
      %27 = dma.hbm_to_vmem [thread:$0]  %s0, 128, %s25, [#allocation4]
    $region5: #{tpu_custom_call.1} parent=1 // pred_fallthru
      _
    // Predicated region
    $region6: #{tpu_custom_call.1} parent=1 // pred_check
      _
    $region7: #{tpu_custom_call.1} parent=1 // pred_check_branch
      %29 = sbr.rel (0) target = $region9
    $region8: #{tpu_custom_call.1} parent=1 // pred_region
      %s31 = ssub.s32 2048, 2048
      %32 = vsyncadd [#allocation7], %s31
      %s33 = sshll.u32 [#allocation6], 4
      %s34 = int_to_ptr.vmem [resolvable:$true] %s33
      %39 = dma.hbm_to_vmem [thread:$0]  %s1, 2048, %s34, [#allocation7], 128, 128, 8
    $region9: #{tpu_custom_call.1} parent=1 // pred_fallthru
      _
    // Predicated region
    $region10: #{tpu_custom_call.1} parent=1 // pred_check
      _
    $region11: #{tpu_custom_call.1} parent=1 // pred_check_branch
      %41 = sbr.rel (0) target = $region13
    $region12: #{tpu_custom_call.1} parent=1 // pred_region
      _
    $region13: #{tpu_custom_call.1} parent=1 // pred_fallthru
      _
    // Predicated region
    $region14: #{tpu_custom_call.1} parent=1 // pred_check
      _
    $region15: #{tpu_custom_call.1} parent=1 // pred_check_branch
      %43 = sbr.rel (0) target = $region17
    $region16: #{tpu_custom_call.1} parent=1 // pred_region
      %s45 = ssub.s32 4096, 4096
      %46 = vsyncadd [#allocation7], %s45
      %s47 = sshll.u32 [#allocation8], 4
      %s48 = int_to_ptr.vmem [resolvable:$true] %s47
      %53 = dma.hbm_to_vmem [thread:$0]  %s3, 4096, %s48, [#allocation7], 128, 128, 8
    $region17: #{tpu_custom_call.1} parent=1 // pred_fallthru
      _
    // Predicated region
    $region18: #{tpu_custom_call.1} parent=1 // pred_check
      _
    $region19: #{tpu_custom_call.1} parent=1 // pred_check_branch
      %55 = sbr.rel (0) target = $region21
    $region20: #{tpu_custom_call.1} parent=1 // pred_region
      _
    $region21: #{tpu_custom_call.1} parent=1 // pred_fallthru
      _
    // Predicated region
    $region22: #{tpu_custom_call.1} parent=1 // pred_check
      _
    $region23: #{tpu_custom_call.1} parent=1 // pred_check_branch
      %57 = sbr.rel (0) target = $region25
    $region24: #{tpu_custom_call.1} parent=1 // pred_region
      %s59 = ssub.s32 6144, 6144
      %60 = vsyncadd [#allocation10], %s59
      %s61 = sshll.u32 [#allocation9], 4
      %s62 = int_to_ptr.vmem [resolvable:$true] %s61
      %67 = dma.hbm_to_vmem [thread:$0]  %s5, 6144, %s62, [#allocation10], 128, 128, 8
    $region25: #{tpu_custom_call.1} parent=1 // pred_fallthru
      _
    // Predicated region
    $region26: #{tpu_custom_call.1} parent=1 // pred_check
      _
    $region27: #{tpu_custom_call.1} parent=1 // pred_check_branch
      %69 = sbr.rel (0) target = $region29
    $region28: #{tpu_custom_call.1} parent=1 // pred_region
      _
    $region29: #{tpu_custom_call.1} parent=1 // pred_fallthru
      _
    // Predicated region
    $region30: #{tpu_custom_call.1} parent=1 // pred_check
      _
    $region31: #{tpu_custom_call.1} parent=1 // pred_check_branch
      %71 = sbr.rel (0) target = $region33
    $region32: #{tpu_custom_call.1} parent=1 // pred_region
      %s73 = ssub.s32 8192, 8192
      %74 = vsyncadd [#allocation10], %s73
      %s75 = sshll.u32 [#allocation11], 4
      %s76 = int_to_ptr.vmem [resolvable:$true] %s75
      %81 = dma.hbm_to_vmem [thread:$0]  %s7, 8192, %s76, [#allocation10], 128, 128, 8
    $region33: #{tpu_custom_call.1} parent=1 // pred_fallthru
      _
    // Predicated region
    $region34: #{tpu_custom_call.1} parent=1 // pred_check
      _
    $region35: #{tpu_custom_call.1} parent=1 // pred_check_branch
      %83 = sbr.rel (0) target = $region37
    $region36: #{tpu_custom_call.1} parent=1 // pred_region
      _
    $region37: #{tpu_custom_call.1} parent=1 // pred_fallthru
      _
    // Predicated region
    $region38: #{tpu_custom_call.1} parent=1 // pred_check
      _
    $region39: #{tpu_custom_call.1} parent=1 // pred_check_branch
      %85 = sbr.rel (0) target = $region41
    $region40: #{tpu_custom_call.1} parent=1 // pred_region
      %86 = dma.done [#allocation4], 128
    $region41: #{tpu_custom_call.1} parent=1 // pred_fallthru
      _
    // Predicated region
    $region42: #{tpu_custom_call.1} parent=1 // pred_check
      _
    $region43: #{tpu_custom_call.1} parent=1 // pred_check_branch
      %88 = sbr.rel (0) target = $region45
    $region44: #{tpu_custom_call.1} parent=1 // pred_region
      %89 = dma.done [#allocation7], 2048
    $region45: #{tpu_custom_call.1} parent=1 // pred_fallthru
      _
    // Predicated region
    $region46: #{tpu_custom_call.1} parent=1 // pred_check
      _
    $region47: #{tpu_custom_call.1} parent=1 // pred_check_branch
      %91 = sbr.rel (0) target = $region49
    $region48: #{tpu_custom_call.1} parent=1 // pred_region
      %92 = dma.done [#allocation7], 4096
    $region49: #{tpu_custom_call.1} parent=1 // pred_fallthru
      _
    // Predicated region
    $region50: #{tpu_custom_call.1} parent=1 // pred_check
      _
    $region51: #{tpu_custom_call.1} parent=1 // pred_check_branch
      %94 = sbr.rel (0) target = $region53
    $region52: #{tpu_custom_call.1} parent=1 // pred_region
      %95 = dma.done [#allocation10], 6144
    $region53: #{tpu_custom_call.1} parent=1 // pred_fallthru
      _
    // Predicated region
    $region54: #{tpu_custom_call.1} parent=1 // pred_check
      _
    $region55: #{tpu_custom_call.1} parent=1 // pred_check_branch
      %97 = sbr.rel (0) target = $region57
    $region56: #{tpu_custom_call.1} parent=1 // pred_region
      %98 = dma.done [#allocation10], 8192
    $region57: #{tpu_custom_call.1} parent=1 // pred_fallthru
      _
    %v99 = vld [vmem:[#allocation3] sm:$0xff]
    %100 = vst [vmem:[#allocation2] sm:$0xff] %v99
    %v101 = vld [vmem:[#allocation6] sm:$0xff]
    %v102 = vld [vmem:[#allocation6 + $0x8] sm:$0xff]
    %v103 = vld [vmem:[#allocation6 + $0x10] sm:$0xff]
    %v104 = vld [vmem:[#allocation6 + $0x18] sm:$0xff]
    %v105 = vld [vmem:[#allocation6 + $0x20] sm:$0xff]
    %v106 = vld [vmem:[#allocation6 + $0x28] sm:$0xff]
    %v107 = vld [vmem:[#allocation6 + $0x30] sm:$0xff]
    %v108 = vld [vmem:[#allocation6 + $0x38] sm:$0xff]
    %v109 = vld [vmem:[#allocation6 + $0x40] sm:$0xff]
    %v110 = vld [vmem:[#allocation6 + $0x48] sm:$0xff]
    %v111 = vld [vmem:[#allocation6 + $0x50] sm:$0xff]
    %v112 = vld [vmem:[#allocation6 + $0x58] sm:$0xff]
    %v113 = vld [vmem:[#allocation6 + $0x60] sm:$0xff]
    %v114 = vld [vmem:[#allocation6 + $0x68] sm:$0xff]
    %v115 = vld [vmem:[#allocation6 + $0x70] sm:$0xff]
    %v116 = vld [vmem:[#allocation6 + $0x78] sm:$0xff]
    %v117 = vld [vmem:[%s2] sm:$0x1]
    %v119 = vlaneseq
    %v120 = vshrl.u32 %v119, 7
    %v121 = vsub.s32 0, %v120
    %v122 = vrot.slane %v117, %v121
    %124 = vmatprep.subr.mxu0 0.0
    %125 = vmatpush1.msra.mxu0 %v116
    %126 = vmatprep.subr.mxu0 0.0
    %127 = vmatpush1.msra.mxu0 %v115
    %128 = vmatprep.subr.mxu0 0.0
    %129 = vmatpush1.msra.mxu0 %v114
    %130 = vmatprep.subr.mxu0 0.0
    %131 = vmatpush1.msra.mxu0 %v113
    %132 = vmatprep.subr.mxu0 0.0
    %133 = vmatpush1.msra.mxu0 %v112
    %134 = vmatprep.subr.mxu0 0.0
    %135 = vmatpush1.msra.mxu0 %v111
    %136 = vmatprep.subr.mxu0 0.0
    %137 = vmatpush1.msra.mxu0 %v110
    %138 = vmatprep.subr.mxu0 0.0
    %139 = vmatpush1.msra.mxu0 %v109
    %140 = vmatprep.subr.mxu0 0.0
    %141 = vmatpush1.msra.mxu0 %v108
    %142 = vmatprep.subr.mxu0 0.0
    %143 = vmatpush1.msra.mxu0 %v107
    %144 = vmatprep.subr.mxu0 0.0
    %145 = vmatpush1.msra.mxu0 %v106
    %146 = vmatprep.subr.mxu0 0.0
    %147 = vmatpush1.msra.mxu0 %v105
    %148 = vmatprep.subr.mxu0 0.0
    %149 = vmatpush1.msra.mxu0 %v104
    %150 = vmatprep.subr.mxu0 0.0
    %151 = vmatpush1.msra.mxu0 %v103
    %152 = vmatprep.subr.mxu0 0.0
    %153 = vmatpush1.msra.mxu0 %v102
    %154 = vmatprep.subr.mxu0 0.0
    %155 = vmatpush1.msra.mxu0 %v101
    %156 = vmatprep.subr.mxu0 0.0
    %157 = vmatpush2.msra.mxu0 0.0
    %158 = vmatprep.subr.mxu0 0.0
    %159 = vmatpush2.msra.mxu0 0.0
    %160 = vmatprep.subr.mxu0 0.0
    %161 = vmatpush2.msra.mxu0 0.0
    %162 = vmatprep.subr.mxu0 0.0
    %163 = vmatpush2.msra.mxu0 0.0
    %164 = vmatprep.subr.mxu0 0.0
    %165 = vmatpush2.msra.mxu0 0.0
    %166 = vmatprep.subr.mxu0 0.0
    %167 = vmatpush2.msra.mxu0 0.0
    %168 = vmatprep.subr.mxu0 0.0
    %169 = vmatpush2.msra.mxu0 0.0
    %170 = vmatprep.subr.mxu0 0.0
    %171 = vmatpush2.msra.mxu0 0.0
    %172 = vmatprep.subr.mxu0 0.0
    %173 = vmatpush2.msra.mxu0 0.0
    %174 = vmatprep.subr.mxu0 0.0
    %175 = vmatpush2.msra.mxu0 0.0
    %176 = vmatprep.subr.mxu0 0.0
    %177 = vmatpush2.msra.mxu0 0.0
    %178 = vmatprep.subr.mxu0 0.0
    %179 = vmatpush2.msra.mxu0 0.0
    %180 = vmatprep.subr.mxu0 0.0
    %181 = vmatpush2.msra.mxu0 0.0
    %182 = vmatprep.subr.mxu0 0.0
    %183 = vmatpush2.msra.mxu0 0.0
    %184 = vmatprep.subr.mxu0 0.0
    %185 = vmatpush2.msra.mxu0 0.0
    %186 = vmatprep.subr.mxu0 0.0
    %187 = vmatpush2.msra.mxu0 0.0
    %188 = vmatprep.mubr.f32.mxu0 0.0
    %189 = vmatmul.mubr.f32.gmra.mxu0 %v99
    %v190 = vpop.f32.mrf.mxu0
    %v191 = vadd.f32 %v122, %v190
    %v192 = vpop.f32.mrf.mxu0
    %193 = vdwg.mxu0
    %v194 = vsub.f32 0.0, %v191
    %v195 = vmul.f32 %v194, 1.442695
    %v196 = vpow.pop %v195
    %v197 = vadd.f32 %v196, 1.0
    %v198 = vrcp.pop %v197
    %v199 = vmul.f32 %v191, %v198
    %200 = vst [vmem:[#allocation2 + $0x8] sm:$0xff] %v199
    %v201 = vld [vmem:[#allocation2] sm:$0xff]
    %v202 = vld [vmem:[#allocation2 + $0x8] sm:$0xff]
    %v203 = vld [vmem:[#allocation8] sm:$0xff]
    %v204 = vld [vmem:[#allocation8 + $0x8] sm:$0xff]
    %v205 = vld [vmem:[#allocation8 + $0x10] sm:$0xff]
    %v206 = vld [vmem:[#allocation8 + $0x18] sm:$0xff]
    %v207 = vld [vmem:[#allocation8 + $0x20] sm:$0xff]
    %v208 = vld [vmem:[#allocation8 + $0x28] sm:$0xff]
    %v209 = vld [vmem:[#allocation8 + $0x30] sm:$0xff]
    %v210 = vld [vmem:[#allocation8 + $0x38] sm:$0xff]
    %v211 = vld [vmem:[#allocation8 + $0x40] sm:$0xff]
    %v212 = vld [vmem:[#allocation8 + $0x48] sm:$0xff]
    %v213 = vld [vmem:[#allocation8 + $0x50] sm:$0xff]
    %v214 = vld [vmem:[#allocation8 + $0x58] sm:$0xff]
    %v215 = vld [vmem:[#allocation8 + $0x60] sm:$0xff]
    %v216 = vld [vmem:[#allocation8 + $0x68] sm:$0xff]
    %v217 = vld [vmem:[#allocation8 + $0x70] sm:$0xff]
    %v218 = vld [vmem:[#allocation8 + $0x78] sm:$0xff]
    %v219 = vld [vmem:[#allocation8 + $0x80] sm:$0xff]
    %v220 = vld [vmem:[#allocation8 + $0x88] sm:$0xff]
    %v221 = vld [vmem:[#allocation8 + $0x90] sm:$0xff]
    %v222 = vld [vmem:[#allocation8 + $0x98] sm:$0xff]
    %v223 = vld [vmem:[#allocation8 + $0xa0] sm:$0xff]
    %v224 = vld [vmem:[#allocation8 + $0xa8] sm:$0xff]
    %v225 = vld [vmem:[#allocation8 + $0xb0] sm:$0xff]
    %v226 = vld [vmem:[#allocation8 + $0xb8] sm:$0xff]
    %v227 = vld [vmem:[#allocation8 + $0xc0] sm:$0xff]
    %v228 = vld [vmem:[#allocation8 + $0xc8] sm:$0xff]
    %v229 = vld [vmem:[#allocation8 + $0xd0] sm:$0xff]
    %v230 = vld [vmem:[#allocation8 + $0xd8] sm:$0xff]
    %v231 = vld [vmem:[#allocation8 + $0xe0] sm:$0xff]
    %v232 = vld [vmem:[#allocation8 + $0xe8] sm:$0xff]
    %v233 = vld [vmem:[#allocation8 + $0xf0] sm:$0xff]
    %v234 = vld [vmem:[#allocation8 + $0xf8] sm:$0xff]
    %v235 = vld [vmem:[%s4] sm:$0x1]
    %v237 = vlaneseq
    %v238 = vshrl.u32 %v237, 7
    %v239 = vsub.s32 0, %v238
    %v240 = vrot.slane %v235, %v239
    %242 = vmatprep.subr.mxu0 0.0
    %243 = vmatpush1.msra.mxu0 %v218
    %244 = vmatprep.subr.mxu0 0.0
    %245 = vmatpush1.msra.mxu0 %v217
    %246 = vmatprep.subr.mxu0 0.0
    %247 = vmatpush1.msra.mxu0 %v216
    %248 = vmatprep.subr.mxu0 0.0
    %249 = vmatpush1.msra.mxu0 %v215
    %250 = vmatprep.subr.mxu0 0.0
    %251 = vmatpush1.msra.mxu0 %v214
    %252 = vmatprep.subr.mxu0 0.0
    %253 = vmatpush1.msra.mxu0 %v213
    %254 = vmatprep.subr.mxu0 0.0
    %255 = vmatpush1.msra.mxu0 %v212
    %256 = vmatprep.subr.mxu0 0.0
    %257 = vmatpush1.msra.mxu0 %v211
    %258 = vmatprep.subr.mxu0 0.0
    %259 = vmatpush1.msra.mxu0 %v210
    %260 = vmatprep.subr.mxu0 0.0
    %261 = vmatpush1.msra.mxu0 %v209
    %262 = vmatprep.subr.mxu0 0.0
    %263 = vmatpush1.msra.mxu0 %v208
    %264 = vmatprep.subr.mxu0 0.0
    %265 = vmatpush1.msra.mxu0 %v207
    %266 = vmatprep.subr.mxu0 0.0
    %267 = vmatpush1.msra.mxu0 %v206
    %268 = vmatprep.subr.mxu0 0.0
    %269 = vmatpush1.msra.mxu0 %v205
    %270 = vmatprep.subr.mxu0 0.0
    %271 = vmatpush1.msra.mxu0 %v204
    %272 = vmatprep.subr.mxu0 0.0
    %273 = vmatpush1.msra.mxu0 %v203
    %274 = vmatprep.subr.mxu0 0.0
    %275 = vmatpush2.msra.mxu0 %v234
    %276 = vmatprep.subr.mxu0 0.0
    %277 = vmatpush2.msra.mxu0 %v233
    %278 = vmatprep.subr.mxu0 0.0
    %279 = vmatpush2.msra.mxu0 %v232
    %280 = vmatprep.subr.mxu0 0.0
    %281 = vmatpush2.msra.mxu0 %v231
    %282 = vmatprep.subr.mxu0 0.0
    %283 = vmatpush2.msra.mxu0 %v230
    %284 = vmatprep.subr.mxu0 0.0
    %285 = vmatpush2.msra.mxu0 %v229
    %286 = vmatprep.subr.mxu0 0.0
    %287 = vmatpush2.msra.mxu0 %v228
    %288 = vmatprep.subr.mxu0 0.0
    %289 = vmatpush2.msra.mxu0 %v227
    %290 = vmatprep.subr.mxu0 0.0
    %291 = vmatpush2.msra.mxu0 %v226
    %292 = vmatprep.subr.mxu0 0.0
    %293 = vmatpush2.msra.mxu0 %v225
    %294 = vmatprep.subr.mxu0 0.0
    %295 = vmatpush2.msra.mxu0 %v224
    %296 = vmatprep.subr.mxu0 0.0
    %297 = vmatpush2.msra.mxu0 %v223
    %298 = vmatprep.subr.mxu0 0.0
    %299 = vmatpush2.msra.mxu0 %v222
    %300 = vmatprep.subr.mxu0 0.0
    %301 = vmatpush2.msra.mxu0 %v221
    %302 = vmatprep.subr.mxu0 0.0
    %303 = vmatpush2.msra.mxu0 %v220
    %304 = vmatprep.subr.mxu0 0.0
    %305 = vmatpush2.msra.mxu0 %v219
    %306 = vmatprep.mubr.f32.mxu0 %v202
    %307 = vmatmul.mubr.f32.gmra.mxu0 %v201
    %v308 = vpop.f32.mrf.mxu0
    %v309 = vadd.f32 %v240, %v308
    %v310 = vpop.f32.mrf.mxu0
    %311 = vdwg.mxu0
    %v312 = vsub.f32 0.0, %v309
    %v313 = vmul.f32 %v312, 1.442695
    %v314 = vpow.pop %v313
    %v315 = vadd.f32 %v314, 1.0
    %v316 = vrcp.pop %v315
    %v317 = vmul.f32 %v309, %v316
    %318 = vst [vmem:[#allocation2 + $0x10] sm:$0xff] %v317
    %v319 = vld [vmem:[#allocation2] sm:$0xff]
    %v320 = vld [vmem:[#allocation2 + $0x8] sm:$0xff]
    %v321 = vld [vmem:[#allocation2 + $0x10] sm:$0xff]
    %v322 = vld [vmem:[#allocation9] sm:$0xff]
    %v323 = vld [vmem:[#allocation9 + $0x8] sm:$0xff]
    %v324 = vld [vmem:[#allocation9 + $0x10] sm:$0xff]
    %v325 = vld [vmem:[#allocation9 + $0x18] sm:$0xff]
    %v326 = vld [vmem:[#allocation9 + $0x20] sm:$0xff]
    %v327 = vld [vmem:[#allocation9 + $0x28] sm:$0xff]
    %v328 = vld [vmem:[#allocation9 + $0x30] sm:$0xff]
    %v329 = vld [vmem:[#allocation9 + $0x38] sm:$0xff]
    %v330 = vld [vmem:[#allocation9 + $0x40] sm:$0xff]
    %v331 = vld [vmem:[#allocation9 + $0x48] sm:$0xff]
    %v332 = vld [vmem:[#allocation9 + $0x50] sm:$0xff]
    %v333 = vld [vmem:[#allocation9 + $0x58] sm:$0xff]
    %v334 = vld [vmem:[#allocation9 + $0x60] sm:$0xff]
    %v335 = vld [vmem:[#allocation9 + $0x68] sm:$0xff]
    %v336 = vld [vmem:[#allocation9 + $0x70] sm:$0xff]
    %v337 = vld [vmem:[#allocation9 + $0x78] sm:$0xff]
    %v338 = vld [vmem:[#allocation9 + $0x80] sm:$0xff]
    %v339 = vld [vmem:[#allocation9 + $0x88] sm:$0xff]
    %v340 = vld [vmem:[#allocation9 + $0x90] sm:$0xff]
    %v341 = vld [vmem:[#allocation9 + $0x98] sm:$0xff]
    %v342 = vld [vmem:[#allocation9 + $0xa0] sm:$0xff]
    %v343 = vld [vmem:[#allocation9 + $0xa8] sm:$0xff]
    %v344 = vld [vmem:[#allocation9 + $0xb0] sm:$0xff]
    %v345 = vld [vmem:[#allocation9 + $0xb8] sm:$0xff]
    %v346 = vld [vmem:[#allocation9 + $0xc0] sm:$0xff]
    %v347 = vld [vmem:[#allocation9 + $0xc8] sm:$0xff]
    %v348 = vld [vmem:[#allocation9 + $0xd0] sm:$0xff]
    %v349 = vld [vmem:[#allocation9 + $0xd8] sm:$0xff]
    %v350 = vld [vmem:[#allocation9 + $0xe0] sm:$0xff]
    %v351 = vld [vmem:[#allocation9 + $0xe8] sm:$0xff]
    %v352 = vld [vmem:[#allocation9 + $0xf0] sm:$0xff]
    %v353 = vld [vmem:[#allocation9 + $0xf8] sm:$0xff]
    %v354 = vld [vmem:[#allocation9 + $0x100] sm:$0xff]
    %v355 = vld [vmem:[#allocation9 + $0x108] sm:$0xff]
    %v356 = vld [vmem:[#allocation9 + $0x110] sm:$0xff]
    %v357 = vld [vmem:[#allocation9 + $0x118] sm:$0xff]
    %v358 = vld [vmem:[#allocation9 + $0x120] sm:$0xff]
    %v359 = vld [vmem:[#allocation9 + $0x128] sm:$0xff]
    %v360 = vld [vmem:[#allocation9 + $0x130] sm:$0xff]
    %v361 = vld [vmem:[#allocation9 + $0x138] sm:$0xff]
    %v362 = vld [vmem:[#allocation9 + $0x140] sm:$0xff]
    %v363 = vld [vmem:[#allocation9 + $0x148] sm:$0xff]
    %v364 = vld [vmem:[#allocation9 + $0x150] sm:$0xff]
    %v365 = vld [vmem:[#allocation9 + $0x158] sm:$0xff]
    %v366 = vld [vmem:[#allocation9 + $0x160] sm:$0xff]
    %v367 = vld [vmem:[#allocation9 + $0x168] sm:$0xff]
    %v368 = vld [vmem:[#allocation9 + $0x170] sm:$0xff]
    %v369 = vld [vmem:[#allocation9 + $0x178] sm:$0xff]
    %v370 = vld [vmem:[%s6] sm:$0x1]
    %v372 = vlaneseq
    %v373 = vshrl.u32 %v372, 7
    %v374 = vsub.s32 0, %v373
    %v375 = vrot.slane %v370, %v374
    %377 = vmatprep.subr.mxu0 0.0
    %378 = vmatpush1.msra.mxu0 %v337
    %379 = vmatprep.subr.mxu0 0.0
    %380 = vmatpush1.msra.mxu0 %v336
    %381 = vmatprep.subr.mxu0 0.0
    %382 = vmatpush1.msra.mxu0 %v335
    %383 = vmatprep.subr.mxu0 0.0
    %384 = vmatpush1.msra.mxu0 %v334
    %385 = vmatprep.subr.mxu0 0.0
    %386 = vmatpush1.msra.mxu0 %v333
    %387 = vmatprep.subr.mxu0 0.0
    %388 = vmatpush1.msra.mxu0 %v332
    %389 = vmatprep.subr.mxu0 0.0
    %390 = vmatpush1.msra.mxu0 %v331
    %391 = vmatprep.subr.mxu0 0.0
    %392 = vmatpush1.msra.mxu0 %v330
    %393 = vmatprep.subr.mxu0 0.0
    %394 = vmatpush1.msra.mxu0 %v329
    %395 = vmatprep.subr.mxu0 0.0
    %396 = vmatpush1.msra.mxu0 %v328
    %397 = vmatprep.subr.mxu0 0.0
    %398 = vmatpush1.msra.mxu0 %v327
    %399 = vmatprep.subr.mxu0 0.0
    %400 = vmatpush1.msra.mxu0 %v326
    %401 = vmatprep.subr.mxu0 0.0
    %402 = vmatpush1.msra.mxu0 %v325
    %403 = vmatprep.subr.mxu0 0.0
    %404 = vmatpush1.msra.mxu0 %v324
    %405 = vmatprep.subr.mxu0 0.0
    %406 = vmatpush1.msra.mxu0 %v323
    %407 = vmatprep.subr.mxu0 0.0
    %408 = vmatpush1.msra.mxu0 %v322
    %409 = vmatprep.subr.mxu0 0.0
    %410 = vmatpush2.msra.mxu0 %v353
    %411 = vmatprep.subr.mxu0 0.0
    %412 = vmatpush2.msra.mxu0 %v352
    %413 = vmatprep.subr.mxu0 0.0
    %414 = vmatpush2.msra.mxu0 %v351
    %415 = vmatprep.subr.mxu0 0.0
    %416 = vmatpush2.msra.mxu0 %v350
    %417 = vmatprep.subr.mxu0 0.0
    %418 = vmatpush2.msra.mxu0 %v349
    %419 = vmatprep.subr.mxu0 0.0
    %420 = vmatpush2.msra.mxu0 %v348
    %421 = vmatprep.subr.mxu0 0.0
    %422 = vmatpush2.msra.mxu0 %v347
    %423 = vmatprep.subr.mxu0 0.0
    %424 = vmatpush2.msra.mxu0 %v346
    %425 = vmatprep.subr.mxu0 0.0
    %426 = vmatpush2.msra.mxu0 %v345
    %427 = vmatprep.subr.mxu0 0.0
    %428 = vmatpush2.msra.mxu0 %v344
    %429 = vmatprep.subr.mxu0 0.0
    %430 = vmatpush2.msra.mxu0 %v343
    %431 = vmatprep.subr.mxu0 0.0
    %432 = vmatpush2.msra.mxu0 %v342
    %433 = vmatprep.subr.mxu0 0.0
    %434 = vmatpush2.msra.mxu0 %v341
    %435 = vmatprep.subr.mxu0 0.0
    %436 = vmatpush2.msra.mxu0 %v340
    %437 = vmatprep.subr.mxu0 0.0
    %438 = vmatpush2.msra.mxu0 %v339
    %439 = vmatprep.subr.mxu0 0.0
    %440 = vmatpush2.msra.mxu0 %v338
    %441 = vmatprep.mubr.f32.mxu0 %v320
    %442 = vmatmul.mubr.f32.gmra.mxu0 %v319
    %v443 = vpop.f32.mrf.mxu0
    %v444 = vadd.f32 %v375, %v443
    %v445 = vpop.f32.mrf.mxu0
    %446 = vdwg.mxu0
    %447 = vmatprep.subr.mxu0 0.0
    %448 = vmatpush1.msra.mxu0 %v369
    %449 = vmatprep.subr.mxu0 0.0
    %450 = vmatpush1.msra.mxu0 %v368
    %451 = vmatprep.subr.mxu0 0.0
    %452 = vmatpush1.msra.mxu0 %v367
    %453 = vmatprep.subr.mxu0 0.0
    %454 = vmatpush1.msra.mxu0 %v366
    %455 = vmatprep.subr.mxu0 0.0
    %456 = vmatpush1.msra.mxu0 %v365
    %457 = vmatprep.subr.mxu0 0.0
    %458 = vmatpush1.msra.mxu0 %v364
    %459 = vmatprep.subr.mxu0 0.0
    %460 = vmatpush1.msra.mxu0 %v363
    %461 = vmatprep.subr.mxu0 0.0
    %462 = vmatpush1.msra.mxu0 %v362
    %463 = vmatprep.subr.mxu0 0.0
    %464 = vmatpush1.msra.mxu0 %v361
    %465 = vmatprep.subr.mxu0 0.0
    %466 = vmatpush1.msra.mxu0 %v360
    %467 = vmatprep.subr.mxu0 0.0
    %468 = vmatpush1.msra.mxu0 %v359
    %469 = vmatprep.subr.mxu0 0.0
    %470 = vmatpush1.msra.mxu0 %v358
    %471 = vmatprep.subr.mxu0 0.0
    %472 = vmatpush1.msra.mxu0 %v357
    %473 = vmatprep.subr.mxu0 0.0
    %474 = vmatpush1.msra.mxu0 %v356
    %475 = vmatprep.subr.mxu0 0.0
    %476 = vmatpush1.msra.mxu0 %v355
    %477 = vmatprep.subr.mxu0 0.0
    %478 = vmatpush1.msra.mxu0 %v354
    %479 = vmatprep.subr.mxu0 0.0
    %480 = vmatpush2.msra.mxu0 0.0
    %481 = vmatprep.subr.mxu0 0.0
    %482 = vmatpush2.msra.mxu0 0.0
    %483 = vmatprep.subr.mxu0 0.0
    %484 = vmatpush2.msra.mxu0 0.0
    %485 = vmatprep.subr.mxu0 0.0
    %486 = vmatpush2.msra.mxu0 0.0
    %487 = vmatprep.subr.mxu0 0.0
    %488 = vmatpush2.msra.mxu0 0.0
    %489 = vmatprep.subr.mxu0 0.0
    %490 = vmatpush2.msra.mxu0 0.0
    %491 = vmatprep.subr.mxu0 0.0
    %492 = vmatpush2.msra.mxu0 0.0
    %493 = vmatprep.subr.mxu0 0.0
    %494 = vmatpush2.msra.mxu0 0.0
    %495 = vmatprep.subr.mxu0 0.0
    %496 = vmatpush2.msra.mxu0 0.0
    %497 = vmatprep.subr.mxu0 0.0
    %498 = vmatpush2.msra.mxu0 0.0
    %499 = vmatprep.subr.mxu0 0.0
    %500 = vmatpush2.msra.mxu0 0.0
    %501 = vmatprep.subr.mxu0 0.0
    %502 = vmatpush2.msra.mxu0 0.0
    %503 = vmatprep.subr.mxu0 0.0
    %504 = vmatpush2.msra.mxu0 0.0
    %505 = vmatprep.subr.mxu0 0.0
    %506 = vmatpush2.msra.mxu0 0.0
    %507 = vmatprep.subr.mxu0 0.0
    %508 = vmatpush2.msra.mxu0 0.0
    %509 = vmatprep.subr.mxu0 0.0
    %510 = vmatpush2.msra.mxu0 0.0
    %511 = vmatprep.mubr.f32.mxu0 0.0
    %512 = vmatmul.mubr.f32.gmra.mxu0 %v321
    %v513 = vpop.f32.mrf.mxu0
    %v514 = vadd.f32 %v444, %v513
    %v515 = vpop.f32.mrf.mxu0
    %516 = vdwg.mxu0
    %v517 = vsub.f32 0.0, %v514
    %v518 = vmul.f32 %v517, 1.442695
    %v519 = vpow.pop %v518
    %v520 = vadd.f32 %v519, 1.0
    %v521 = vrcp.pop %v520
    %v522 = vmul.f32 %v514, %v521
    %523 = vst [vmem:[#allocation2 + $0x18] sm:$0xff] %v522
    %v524 = vld [vmem:[#allocation2] sm:$0xff]
    %v525 = vld [vmem:[#allocation2 + $0x8] sm:$0xff]
    %v526 = vld [vmem:[#allocation2 + $0x10] sm:$0xff]
    %v527 = vld [vmem:[#allocation2 + $0x18] sm:$0xff]
    %v528 = vld [vmem:[#allocation11] sm:$0xff]
    %v529 = vld [vmem:[#allocation11 + $0x8] sm:$0xff]
    %v530 = vld [vmem:[#allocation11 + $0x10] sm:$0xff]
    %v531 = vld [vmem:[#allocation11 + $0x18] sm:$0xff]
    %v532 = vld [vmem:[#allocation11 + $0x20] sm:$0xff]
    %v533 = vld [vmem:[#allocation11 + $0x28] sm:$0xff]
    %v534 = vld [vmem:[#allocation11 + $0x30] sm:$0xff]
    %v535 = vld [vmem:[#allocation11 + $0x38] sm:$0xff]
    %v536 = vld [vmem:[#allocation11 + $0x40] sm:$0xff]
    %v537 = vld [vmem:[#allocation11 + $0x48] sm:$0xff]
    %v538 = vld [vmem:[#allocation11 + $0x50] sm:$0xff]
    %v539 = vld [vmem:[#allocation11 + $0x58] sm:$0xff]
    %v540 = vld [vmem:[#allocation11 + $0x60] sm:$0xff]
    %v541 = vld [vmem:[#allocation11 + $0x68] sm:$0xff]
    %v542 = vld [vmem:[#allocation11 + $0x70] sm:$0xff]
    %v543 = vld [vmem:[#allocation11 + $0x78] sm:$0xff]
    %v544 = vld [vmem:[#allocation11 + $0x80] sm:$0xff]
    %v545 = vld [vmem:[#allocation11 + $0x88] sm:$0xff]
    %v546 = vld [vmem:[#allocation11 + $0x90] sm:$0xff]
    %v547 = vld [vmem:[#allocation11 + $0x98] sm:$0xff]
    %v548 = vld [vmem:[#allocation11 + $0xa0] sm:$0xff]
    %v549 = vld [vmem:[#allocation11 + $0xa8] sm:$0xff]
    %v550 = vld [vmem:[#allocation11 + $0xb0] sm:$0xff]
    %v551 = vld [vmem:[#allocation11 + $0xb8] sm:$0xff]
    %v552 = vld [vmem:[#allocation11 + $0xc0] sm:$0xff]
    %v553 = vld [vmem:[#allocation11 + $0xc8] sm:$0xff]
    %v554 = vld [vmem:[#allocation11 + $0xd0] sm:$0xff]
    %v555 = vld [vmem:[#allocation11 + $0xd8] sm:$0xff]
    %v556 = vld [vmem:[#allocation11 + $0xe0] sm:$0xff]
    %v557 = vld [vmem:[#allocation11 + $0xe8] sm:$0xff]
    %v558 = vld [vmem:[#allocation11 + $0xf0] sm:$0xff]
    %v559 = vld [vmem:[#allocation11 + $0xf8] sm:$0xff]
    %v560 = vld [vmem:[#allocation11 + $0x100] sm:$0xff]
    %v561 = vld [vmem:[#allocation11 + $0x108] sm:$0xff]
    %v562 = vld [vmem:[#allocation11 + $0x110] sm:$0xff]
    %v563 = vld [vmem:[#allocation11 + $0x118] sm:$0xff]
    %v564 = vld [vmem:[#allocation11 + $0x120] sm:$0xff]
    %v565 = vld [vmem:[#allocation11 + $0x128] sm:$0xff]
    %v566 = vld [vmem:[#allocation11 + $0x130] sm:$0xff]
    %v567 = vld [vmem:[#allocation11 + $0x138] sm:$0xff]
    %v568 = vld [vmem:[#allocation11 + $0x140] sm:$0xff]
    %v569 = vld [vmem:[#allocation11 + $0x148] sm:$0xff]
    %v570 = vld [vmem:[#allocation11 + $0x150] sm:$0xff]
    %v571 = vld [vmem:[#allocation11 + $0x158] sm:$0xff]
    %v572 = vld [vmem:[#allocation11 + $0x160] sm:$0xff]
    %v573 = vld [vmem:[#allocation11 + $0x168] sm:$0xff]
    %v574 = vld [vmem:[#allocation11 + $0x170] sm:$0xff]
    %v575 = vld [vmem:[#allocation11 + $0x178] sm:$0xff]
    %v576 = vld [vmem:[#allocation11 + $0x180] sm:$0xff]
    %v577 = vld [vmem:[#allocation11 + $0x188] sm:$0xff]
    %v578 = vld [vmem:[#allocation11 + $0x190] sm:$0xff]
    %v579 = vld [vmem:[#allocation11 + $0x198] sm:$0xff]
    %v580 = vld [vmem:[#allocation11 + $0x1a0] sm:$0xff]
    %v581 = vld [vmem:[#allocation11 + $0x1a8] sm:$0xff]
    %v582 = vld [vmem:[#allocation11 + $0x1b0] sm:$0xff]
    %v583 = vld [vmem:[#allocation11 + $0x1b8] sm:$0xff]
    %v584 = vld [vmem:[#allocation11 + $0x1c0] sm:$0xff]
    %v585 = vld [vmem:[#allocation11 + $0x1c8] sm:$0xff]
    %v586 = vld [vmem:[#allocation11 + $0x1d0] sm:$0xff]
    %v587 = vld [vmem:[#allocation11 + $0x1d8] sm:$0xff]
    %v588 = vld [vmem:[#allocation11 + $0x1e0] sm:$0xff]
    %v589 = vld [vmem:[#allocation11 + $0x1e8] sm:$0xff]
    %v590 = vld [vmem:[#allocation11 + $0x1f0] sm:$0xff]
    %v591 = vld [vmem:[#allocation11 + $0x1f8] sm:$0xff]
    %v592 = vld [vmem:[%s8] sm:$0x1]
    %v594 = vlaneseq
    %v595 = vshrl.u32 %v594, 7
    %v596 = vsub.s32 0, %v595
    %v597 = vrot.slane %v592, %v596
    %599 = vmatprep.subr.mxu0 0.0
    %600 = vmatpush1.msra.mxu0 %v543
    %601 = vmatprep.subr.mxu0 0.0
    %602 = vmatpush1.msra.mxu0 %v542
    %603 = vmatprep.subr.mxu0 0.0
    %604 = vmatpush1.msra.mxu0 %v541
    %605 = vmatprep.subr.mxu0 0.0
    %606 = vmatpush1.msra.mxu0 %v540
    %607 = vmatprep.subr.mxu0 0.0
    %608 = vmatpush1.msra.mxu0 %v539
    %609 = vmatprep.subr.mxu0 0.0
    %610 = vmatpush1.msra.mxu0 %v538
    %611 = vmatprep.subr.mxu0 0.0
    %612 = vmatpush1.msra.mxu0 %v537
    %613 = vmatprep.subr.mxu0 0.0
    %614 = vmatpush1.msra.mxu0 %v536
    %615 = vmatprep.subr.mxu0 0.0
    %616 = vmatpush1.msra.mxu0 %v535
    %617 = vmatprep.subr.mxu0 0.0
    %618 = vmatpush1.msra.mxu0 %v534
    %619 = vmatprep.subr.mxu0 0.0
    %620 = vmatpush1.msra.mxu0 %v533
    %621 = vmatprep.subr.mxu0 0.0
    %622 = vmatpush1.msra.mxu0 %v532
    %623 = vmatprep.subr.mxu0 0.0
    %624 = vmatpush1.msra.mxu0 %v531
    %625 = vmatprep.subr.mxu0 0.0
    %626 = vmatpush1.msra.mxu0 %v530
    %627 = vmatprep.subr.mxu0 0.0
    %628 = vmatpush1.msra.mxu0 %v529
    %629 = vmatprep.subr.mxu0 0.0
    %630 = vmatpush1.msra.mxu0 %v528
    %631 = vmatprep.subr.mxu0 0.0
    %632 = vmatpush2.msra.mxu0 %v559
    %633 = vmatprep.subr.mxu0 0.0
    %634 = vmatpush2.msra.mxu0 %v558
    %635 = vmatprep.subr.mxu0 0.0
    %636 = vmatpush2.msra.mxu0 %v557
    %637 = vmatprep.subr.mxu0 0.0
    %638 = vmatpush2.msra.mxu0 %v556
    %639 = vmatprep.subr.mxu0 0.0
    %640 = vmatpush2.msra.mxu0 %v555
    %641 = vmatprep.subr.mxu0 0.0
    %642 = vmatpush2.msra.mxu0 %v554
    %643 = vmatprep.subr.mxu0 0.0
    %644 = vmatpush2.msra.mxu0 %v553
    %645 = vmatprep.subr.mxu0 0.0
    %646 = vmatpush2.msra.mxu0 %v552
    %647 = vmatprep.subr.mxu0 0.0
    %648 = vmatpush2.msra.mxu0 %v551
    %649 = vmatprep.subr.mxu0 0.0
    %650 = vmatpush2.msra.mxu0 %v550
    %651 = vmatprep.subr.mxu0 0.0
    %652 = vmatpush2.msra.mxu0 %v549
    %653 = vmatprep.subr.mxu0 0.0
    %654 = vmatpush2.msra.mxu0 %v548
    %655 = vmatprep.subr.mxu0 0.0
    %656 = vmatpush2.msra.mxu0 %v547
    %657 = vmatprep.subr.mxu0 0.0
    %658 = vmatpush2.msra.mxu0 %v546
    %659 = vmatprep.subr.mxu0 0.0
    %660 = vmatpush2.msra.mxu0 %v545
    %661 = vmatprep.subr.mxu0 0.0
    %662 = vmatpush2.msra.mxu0 %v544
    %663 = vmatprep.mubr.f32.mxu0 %v525
    %664 = vmatmul.mubr.f32.gmra.mxu0 %v524
    %v665 = vpop.f32.mrf.mxu0
    %v666 = vadd.f32 %v597, %v665
    %v667 = vpop.f32.mrf.mxu0
    %668 = vdwg.mxu0
    %669 = vmatprep.subr.mxu0 0.0
    %670 = vmatpush1.msra.mxu0 %v575
    %671 = vmatprep.subr.mxu0 0.0
    %672 = vmatpush1.msra.mxu0 %v574
    %673 = vmatprep.subr.mxu0 0.0
    %674 = vmatpush1.msra.mxu0 %v573
    %675 = vmatprep.subr.mxu0 0.0
    %676 = vmatpush1.msra.mxu0 %v572
    %677 = vmatprep.subr.mxu0 0.0
    %678 = vmatpush1.msra.mxu0 %v571
    %679 = vmatprep.subr.mxu0 0.0
    %680 = vmatpush1.msra.mxu0 %v570
    %681 = vmatprep.subr.mxu0 0.0
    %682 = vmatpush1.msra.mxu0 %v569
    %683 = vmatprep.subr.mxu0 0.0
    %684 = vmatpush1.msra.mxu0 %v568
    %685 = vmatprep.subr.mxu0 0.0
    %686 = vmatpush1.msra.mxu0 %v567
    %687 = vmatprep.subr.mxu0 0.0
    %688 = vmatpush1.msra.mxu0 %v566
    %689 = vmatprep.subr.mxu0 0.0
    %690 = vmatpush1.msra.mxu0 %v565
    %691 = vmatprep.subr.mxu0 0.0
    %692 = vmatpush1.msra.mxu0 %v564
    %693 = vmatprep.subr.mxu0 0.0
    %694 = vmatpush1.msra.mxu0 %v563
    %695 = vmatprep.subr.mxu0 0.0
    %696 = vmatpush1.msra.mxu0 %v562
    %697 = vmatprep.subr.mxu0 0.0
    %698 = vmatpush1.msra.mxu0 %v561
    %699 = vmatprep.subr.mxu0 0.0
    %700 = vmatpush1.msra.mxu0 %v560
    %701 = vmatprep.subr.mxu0 0.0
    %702 = vmatpush2.msra.mxu0 %v591
    %703 = vmatprep.subr.mxu0 0.0
    %704 = vmatpush2.msra.mxu0 %v590
    %705 = vmatprep.subr.mxu0 0.0
    %706 = vmatpush2.msra.mxu0 %v589
    %707 = vmatprep.subr.mxu0 0.0
    %708 = vmatpush2.msra.mxu0 %v588
    %709 = vmatprep.subr.mxu0 0.0
    %710 = vmatpush2.msra.mxu0 %v587
    %711 = vmatprep.subr.mxu0 0.0
    %712 = vmatpush2.msra.mxu0 %v586
    %713 = vmatprep.subr.mxu0 0.0
    %714 = vmatpush2.msra.mxu0 %v585
    %715 = vmatprep.subr.mxu0 0.0
    %716 = vmatpush2.msra.mxu0 %v584
    %717 = vmatprep.subr.mxu0 0.0
    %718 = vmatpush2.msra.mxu0 %v583
    %719 = vmatprep.subr.mxu0 0.0
    %720 = vmatpush2.msra.mxu0 %v582
    %721 = vmatprep.subr.mxu0 0.0
    %722 = vmatpush2.msra.mxu0 %v581
    %723 = vmatprep.subr.mxu0 0.0
    %724 = vmatpush2.msra.mxu0 %v580
    %725 = vmatprep.subr.mxu0 0.0
    %726 = vmatpush2.msra.mxu0 %v579
    %727 = vmatprep.subr.mxu0 0.0
    %728 = vmatpush2.msra.mxu0 %v578
    %729 = vmatprep.subr.mxu0 0.0
    %730 = vmatpush2.msra.mxu0 %v577
    %731 = vmatprep.subr.mxu0 0.0
    %732 = vmatpush2.msra.mxu0 %v576
    %733 = vmatprep.mubr.f32.mxu0 %v527
    %734 = vmatmul.mubr.f32.gmra.mxu0 %v526
    %v735 = vpop.f32.mrf.mxu0
    %v736 = vadd.f32 %v666, %v735
    %v737 = vpop.f32.mrf.mxu0
    %738 = vdwg.mxu0
    %739 = vst [vmem:[#allocation12] sm:$0xff] %v736
    // Predicated region
    $region58: #{tpu_custom_call.1} parent=1 // pred_check
      _
    $region59: #{tpu_custom_call.1} parent=1 // pred_check_branch
      %741 = sbr.rel (0) target = $region61
    $region60: #{tpu_custom_call.1} parent=1 // pred_region
      %s743 = ssub.s32 128, 128
      %744 = vsyncadd [#allocation5], %s743
      %s746 = sshll.u32 [#allocation12], 4
      %s747 = int_to_ptr.vmem [resolvable:$true] %s746
      %749 = dma.vmem_to_hbm [thread:$0]  %s747, 128, %s9, [#allocation5]
    $region61: #{tpu_custom_call.1} parent=1 // pred_fallthru
      _
    // Predicated region
    $region62: #{tpu_custom_call.1} parent=1 // pred_check
      _
    $region63: #{tpu_custom_call.1} parent=1 // pred_check_branch
      %751 = sbr.rel (0) target = $region65
    $region64: #{tpu_custom_call.1} parent=1 // pred_region
      %752 = dma.done [#allocation5], 128
    $region65: #{tpu_custom_call.1} parent=1 // pred_fallthru
      _
    %753 = vsyncpa [#allocation4], 1
    %754 = vsyncpa [#allocation7], 1
    %755 = vsyncpa [#allocation10], 1
    %756 = vsyncpa [#allocation5], 1

// kernel: tpu_custom_call.1
$region0: #{tpu_custom_call.1}
  #allocation0 [shape = 'u32[]', space=smem, size = 0x4, offset = 0x4, fixed_abs, tag = 'smem constant byte address 0x4 - core index']
  #allocation1 [shape = 'u32[144,128]{1,0:T(1,128)}', space=vmem, size = 0x12000, scoped, tag = 'internal scratch']
  #allocation2 [shape = 'f32[8,512]{1,0:T(8,128)}', space=vmem, size = 0x4000, scoped, tag = 'scratch operand']
  %s0 = inlined_call_operand.hbm [shape: f32[8,128], index: 0, kind: input, shape index: {}]
  %s1 = inlined_call_operand.hbm [shape: f32[128,128], index: 1, kind: input, shape index: {}]
  %s2 = inlined_call_operand.vmem [shape: f32[1,128], index: 2, kind: input, shape index: {}]
  %s3 = inlined_call_operand.hbm [shape: f32[256,128], index: 3, kind: input, shape index: {}]
  %s4 = inlined_call_operand.vmem [shape: f32[1,128], index: 4, kind: input, shape index: {}]
  %s5 = inlined_call_operand.hbm [shape: f32[384,128], index: 5, kind: input, shape index: {}]
  %s6 = inlined_call_operand.vmem [shape: f32[1,128], index: 6, kind: input, shape index: {}]
  %s7 = inlined_call_operand.hbm [shape: f32[512,128], index: 7, kind: input, shape index: {}]
  %s8 = inlined_call_operand.vmem [shape: f32[1,128], index: 8, kind: input, shape index: {}]
  %s9 = inlined_call_operand.hbm [shape: f32[8,128], index: 9, kind: output, shape index: {}]
  %s10 = sld [smem:[#allocation0]]
  $region66: #{tpu_custom_call.1} parent=0
    _
  %s12 = ssub.s32 1, %s10
  %s13 = scalar_select 0, %s12, %s10
  $region1: #{tpu_custom_call.1} parent=0
    #allocation3 [shape = 'u8[4096]{0}', space=vmem, size = 0x1000, scoped, tag = 'input window, operand 0, single buffered']
    #allocation4 [shape = 's32[1]{0}', space=sflag, size = 0x4, scoped, tag = 'scoped memory for tpu_custom_call.1']
    #allocation5 [shape = 's32[1]{0}', space=sflag, size = 0x4, scoped, tag = 'scoped memory for tpu_custom_call.1']
    #allocation6 [shape = 'u8[65536]{0}', space=vmem, size = 0x10000, scoped, tag = 'input window, operand 1, single buffered']
    #allocation7 [shape = 's32[1]{0}', space=sflag, size = 0x4, scoped, tag = 'scoped memory for tpu_custom_call.1']
    #allocation8 [shape = 'u8[131072]{0}', space=vmem, size = 0x20000, scoped, tag = 'input window, operand 3, single buffered']
    #allocation9 [shape = 'u8[196608]{0}', space=vmem, size = 0x30000, scoped, tag = 'input window, operand 5, single buffered']
    #allocation10 [shape = 's32[1]{0}', space=sflag, size = 0x4, scoped, tag = 'scoped memory for tpu_custom_call.1']
    #allocation11 [shape = 'u8[262144]{0}', space=vmem, size = 0x40000, scoped, tag = 'input window, operand 7, single buffered']
    #allocation12 [shape = 'u8[4096]{0}', space=vmem, size = 0x1000, scoped, tag = 'output window, operand 0, single buffered']
    %14 = vsyncpa [#allocation4], 0
    %15 = vsyncpa [#allocation7], 0
    %16 = vsyncpa [#allocation10], 0
    %17 = vsyncpa [#allocation5], 0
    // Predicated region
    $region2: #{tpu_custom_call.1} parent=1 // pred_check
      _
    $region3: #{tpu_custom_call.1} parent=1 // pred_check_branch
      %19 = sbr.rel (0) target = $region5
    $region4: #{tpu_custom_call.1} parent=1 // pred_region
      %s21 = ssub.s32 128, 128
      %22 = vsyncadd [#allocation4], %s21
      %s24 = sshll.u32 [#allocation3], 4
      %s25 = int_to_ptr.vmem [resolvable:$true] %s24
      %27 = dma.hbm_to_vmem [thread:$0]  %s0, 128, %s25, [#allocation4]
    $region5: #{tpu_custom_call.1} parent=1 // pred_fallthru
      _
    // Predicated region
    $region6: #{tpu_custom_call.1} parent=1 // pred_check
      _
    $region7: #{tpu_custom_call.1} parent=1 // pred_check_branch
      %29 = sbr.rel (0) target = $region9
    $region8: #{tpu_custom_call.1} parent=1 // pred_region
      %s31 = ssub.s32 2048, 2048
      %32 = vsyncadd [#allocation7], %s31
      %s33 = sshll.u32 [#allocation6], 4
      %s34 = int_to_ptr.vmem [resolvable:$true] %s33
      %39 = dma.hbm_to_vmem [thread:$0]  %s1, 2048, %s34, [#allocation7], 128, 128, 8
    $region9: #{tpu_custom_call.1} parent=1 // pred_fallthru
      _
    // Predicated region
    $region10: #{tpu_custom_call.1} parent=1 // pred_check
      _
    $region11: #{tpu_custom_call.1} parent=1 // pred_check_branch
      %41 = sbr.rel (0) target = $region13
    $region12: #{tpu_custom_call.1} parent=1 // pred_region
      _
    $region13: #{tpu_custom_call.1} parent=1 // pred_fallthru
      _
    // Predicated region
    $region14: #{tpu_custom_call.1} parent=1 // pred_check
      _
    $region15: #{tpu_custom_call.1} parent=1 // pred_check_branch
      %43 = sbr.rel (0) target = $region17
    $region16: #{tpu_custom_call.1} parent=1 // pred_region
      %s45 = ssub.s32 4096, 4096
      %46 = vsyncadd [#allocation7], %s45
      %s47 = sshll.u32 [#allocation8], 4
      %s48 = int_to_ptr.vmem [resolvable:$true] %s47
      %53 = dma.hbm_to_vmem [thread:$0]  %s3, 4096, %s48, [#allocation7], 128, 128, 8
    $region17: #{tpu_custom_call.1} parent=1 // pred_fallthru
      _
    // Predicated region
    $region18: #{tpu_custom_call.1} parent=1 // pred_check
      _
    $region19: #{tpu_custom_call.1} parent=1 // pred_check_branch
      %55 = sbr.rel (0) target = $region21
    $region20: #{tpu_custom_call.1} parent=1 // pred_region
      _
    $region21: #{tpu_custom_call.1} parent=1 // pred_fallthru
      _
    // Predicated region
    $region22: #{tpu_custom_call.1} parent=1 // pred_check
      _
    $region23: #{tpu_custom_call.1} parent=1 // pred_check_branch
      %57 = sbr.rel (0) target = $region25
    $region24: #{tpu_custom_call.1} parent=1 // pred_region
      %s59 = ssub.s32 6144, 6144
      %60 = vsyncadd [#allocation10], %s59
      %s61 = sshll.u32 [#allocation9], 4
      %s62 = int_to_ptr.vmem [resolvable:$true] %s61
      %67 = dma.hbm_to_vmem [thread:$0]  %s5, 6144, %s62, [#allocation10], 128, 128, 8
    $region25: #{tpu_custom_call.1} parent=1 // pred_fallthru
      _
    // Predicated region
    $region26: #{tpu_custom_call.1} parent=1 // pred_check
      _
    $region27: #{tpu_custom_call.1} parent=1 // pred_check_branch
      %69 = sbr.rel (0) target = $region29
    $region28: #{tpu_custom_call.1} parent=1 // pred_region
      _
    $region29: #{tpu_custom_call.1} parent=1 // pred_fallthru
      _
    // Predicated region
    $region30: #{tpu_custom_call.1} parent=1 // pred_check
      _
    $region31: #{tpu_custom_call.1} parent=1 // pred_check_branch
      %71 = sbr.rel (0) target = $region33
    $region32: #{tpu_custom_call.1} parent=1 // pred_region
      %s73 = ssub.s32 8192, 8192
      %74 = vsyncadd [#allocation10], %s73
      %s75 = sshll.u32 [#allocation11], 4
      %s76 = int_to_ptr.vmem [resolvable:$true] %s75
      %81 = dma.hbm_to_vmem [thread:$0]  %s7, 8192, %s76, [#allocation10], 128, 128, 8
    $region33: #{tpu_custom_call.1} parent=1 // pred_fallthru
      _
    // Predicated region
    $region34: #{tpu_custom_call.1} parent=1 // pred_check
      _
    $region35: #{tpu_custom_call.1} parent=1 // pred_check_branch
      %83 = sbr.rel (0) target = $region37
    $region36: #{tpu_custom_call.1} parent=1 // pred_region
      _
    $region37: #{tpu_custom_call.1} parent=1 // pred_fallthru
      _
    // Predicated region
    $region38: #{tpu_custom_call.1} parent=1 // pred_check
      _
    $region39: #{tpu_custom_call.1} parent=1 // pred_check_branch
      %85 = sbr.rel (0) target = $region41
    $region40: #{tpu_custom_call.1} parent=1 // pred_region
      %86 = dma.done [#allocation4], 128
    $region41: #{tpu_custom_call.1} parent=1 // pred_fallthru
      _
    // Predicated region
    $region42: #{tpu_custom_call.1} parent=1 // pred_check
      _
    $region43: #{tpu_custom_call.1} parent=1 // pred_check_branch
      %88 = sbr.rel (0) target = $region45
    $region44: #{tpu_custom_call.1} parent=1 // pred_region
      %89 = dma.done [#allocation7], 2048
    $region45: #{tpu_custom_call.1} parent=1 // pred_fallthru
      _
    // Predicated region
    $region46: #{tpu_custom_call.1} parent=1 // pred_check
      _
    $region47: #{tpu_custom_call.1} parent=1 // pred_check_branch
      %91 = sbr.rel (0) target = $region49
    $region48: #{tpu_custom_call.1} parent=1 // pred_region
      %92 = dma.done [#allocation7], 4096
    $region49: #{tpu_custom_call.1} parent=1 // pred_fallthru
      _
    // Predicated region
    $region50: #{tpu_custom_call.1} parent=1 // pred_check
      _
    $region51: #{tpu_custom_call.1} parent=1 // pred_check_branch
      %94 = sbr.rel (0) target = $region53
    $region52: #{tpu_custom_call.1} parent=1 // pred_region
      %95 = dma.done [#allocation10], 6144
    $region53: #{tpu_custom_call.1} parent=1 // pred_fallthru
      _
    // Predicated region
    $region54: #{tpu_custom_call.1} parent=1 // pred_check
      _
    $region55: #{tpu_custom_call.1} parent=1 // pred_check_branch
      %97 = sbr.rel (0) target = $region57
    $region56: #{tpu_custom_call.1} parent=1 // pred_region
      %98 = dma.done [#allocation10], 8192
    $region57: #{tpu_custom_call.1} parent=1 // pred_fallthru
      _
    %v99 = vld [vmem:[#allocation3] sm:$0xff]
    %100 = vst [vmem:[#allocation2] sm:$0xff] %v99
    %v101 = vld [vmem:[#allocation6] sm:$0xff]
    %v102 = vld [vmem:[#allocation6 + $0x8] sm:$0xff]
    %v103 = vld [vmem:[#allocation6 + $0x10] sm:$0xff]
    %v104 = vld [vmem:[#allocation6 + $0x18] sm:$0xff]
    %v105 = vld [vmem:[#allocation6 + $0x20] sm:$0xff]
    %v106 = vld [vmem:[#allocation6 + $0x28] sm:$0xff]
    %v107 = vld [vmem:[#allocation6 + $0x30] sm:$0xff]
    %v108 = vld [vmem:[#allocation6 + $0x38] sm:$0xff]
    %v109 = vld [vmem:[#allocation6 + $0x40] sm:$0xff]
    %v110 = vld [vmem:[#allocation6 + $0x48] sm:$0xff]
    %v111 = vld [vmem:[#allocation6 + $0x50] sm:$0xff]
    %v112 = vld [vmem:[#allocation6 + $0x58] sm:$0xff]
    %v113 = vld [vmem:[#allocation6 + $0x60] sm:$0xff]
    %v114 = vld [vmem:[#allocation6 + $0x68] sm:$0xff]
    %v115 = vld [vmem:[#allocation6 + $0x70] sm:$0xff]
    %v116 = vld [vmem:[#allocation6 + $0x78] sm:$0xff]
    %v117 = vld [vmem:[%s2] sm:$0x1]
    %v119 = vlaneseq
    %v120 = vshrl.u32 %v119, 7
    %v121 = vsub.s32 0, %v120
    %v122 = vrot.slane %v117, %v121
    %124 = vmatprep.subr.mxu0 0.0
    %125 = vmatpush1.msra.mxu0 %v116
    %126 = vmatprep.subr.mxu0 0.0
    %127 = vmatpush1.msra.mxu0 %v115
    %128 = vmatprep.subr.mxu0 0.0
    %129 = vmatpush1.msra.mxu0 %v114
    %130 = vmatprep.subr.mxu0 0.0
    %131 = vmatpush1.msra.mxu0 %v113
    %132 = vmatprep.subr.mxu0 0.0
    %133 = vmatpush1.msra.mxu0 %v112
    %134 = vmatprep.subr.mxu0 0.0
    %135 = vmatpush1.msra.mxu0 %v111
    %136 = vmatprep.subr.mxu0 0.0
    %137 = vmatpush1.msra.mxu0 %v110
    %138 = vmatprep.subr.mxu0 0.0
    %139 = vmatpush1.msra.mxu0 %v109
    %140 = vmatprep.subr.mxu0 0.0
    %141 = vmatpush1.msra.mxu0 %v108
    %142 = vmatprep.subr.mxu0 0.0
    %143 = vmatpush1.msra.mxu0 %v107
    %144 = vmatprep.subr.mxu0 0.0
    %145 = vmatpush1.msra.mxu0 %v106
    %146 = vmatprep.subr.mxu0 0.0
    %147 = vmatpush1.msra.mxu0 %v105
    %148 = vmatprep.subr.mxu0 0.0
    %149 = vmatpush1.msra.mxu0 %v104
    %150 = vmatprep.subr.mxu0 0.0
    %151 = vmatpush1.msra.mxu0 %v103
    %152 = vmatprep.subr.mxu0 0.0
    %153 = vmatpush1.msra.mxu0 %v102
    %154 = vmatprep.subr.mxu0 0.0
    %155 = vmatpush1.msra.mxu0 %v101
    %156 = vmatprep.subr.mxu0 0.0
    %157 = vmatpush2.msra.mxu0 0.0
    %158 = vmatprep.subr.mxu0 0.0
    %159 = vmatpush2.msra.mxu0 0.0
    %160 = vmatprep.subr.mxu0 0.0
    %161 = vmatpush2.msra.mxu0 0.0
    %162 = vmatprep.subr.mxu0 0.0
    %163 = vmatpush2.msra.mxu0 0.0
    %164 = vmatprep.subr.mxu0 0.0
    %165 = vmatpush2.msra.mxu0 0.0
    %166 = vmatprep.subr.mxu0 0.0
    %167 = vmatpush2.msra.mxu0 0.0
    %168 = vmatprep.subr.mxu0 0.0
    %169 = vmatpush2.msra.mxu0 0.0
    %170 = vmatprep.subr.mxu0 0.0
    %171 = vmatpush2.msra.mxu0 0.0
    %172 = vmatprep.subr.mxu0 0.0
    %173 = vmatpush2.msra.mxu0 0.0
    %174 = vmatprep.subr.mxu0 0.0
    %175 = vmatpush2.msra.mxu0 0.0
    %176 = vmatprep.subr.mxu0 0.0
    %177 = vmatpush2.msra.mxu0 0.0
    %178 = vmatprep.subr.mxu0 0.0
    %179 = vmatpush2.msra.mxu0 0.0
    %180 = vmatprep.subr.mxu0 0.0
    %181 = vmatpush2.msra.mxu0 0.0
    %182 = vmatprep.subr.mxu0 0.0
    %183 = vmatpush2.msra.mxu0 0.0
    %184 = vmatprep.subr.mxu0 0.0
    %185 = vmatpush2.msra.mxu0 0.0
    %186 = vmatprep.subr.mxu0 0.0
    %187 = vmatpush2.msra.mxu0 0.0
    %188 = vmatprep.mubr.f32.mxu0 0.0
    %189 = vmatmul.mubr.f32.gmra.mxu0 %v99
    %v190 = vpop.f32.mrf.mxu0
    %v191 = vadd.f32 %v122, %v190
    %v192 = vpop.f32.mrf.mxu0
    %193 = vdwg.mxu0
    %v194 = vsub.f32 0.0, %v191
    %v195 = vmul.f32 %v194, 1.442695
    %v196 = vpow.pop %v195
    %v197 = vadd.f32 %v196, 1.0
    %v198 = vrcp.pop %v197
    %v199 = vmul.f32 %v191, %v198
    %200 = vst [vmem:[#allocation2 + $0x8] sm:$0xff] %v199
    %v201 = vld [vmem:[#allocation2] sm:$0xff]
    %v202 = vld [vmem:[#allocation2 + $0x8] sm:$0xff]
    %v203 = vld [vmem:[#allocation8] sm:$0xff]
    %v204 = vld [vmem:[#allocation8 + $0x8] sm:$0xff]
    %v205 = vld [vmem:[#allocation8 + $0x10] sm:$0xff]
    %v206 = vld [vmem:[#allocation8 + $0x18] sm:$0xff]
    %v207 = vld [vmem:[#allocation8 + $0x20] sm:$0xff]
    %v208 = vld [vmem:[#allocation8 + $0x28] sm:$0xff]
    %v209 = vld [vmem:[#allocation8 + $0x30] sm:$0xff]
    %v210 = vld [vmem:[#allocation8 + $0x38] sm:$0xff]
    %v211 = vld [vmem:[#allocation8 + $0x40] sm:$0xff]
    %v212 = vld [vmem:[#allocation8 + $0x48] sm:$0xff]
    %v213 = vld [vmem:[#allocation8 + $0x50] sm:$0xff]
    %v214 = vld [vmem:[#allocation8 + $0x58] sm:$0xff]
    %v215 = vld [vmem:[#allocation8 + $0x60] sm:$0xff]
    %v216 = vld [vmem:[#allocation8 + $0x68] sm:$0xff]
    %v217 = vld [vmem:[#allocation8 + $0x70] sm:$0xff]
    %v218 = vld [vmem:[#allocation8 + $0x78] sm:$0xff]
    %v219 = vld [vmem:[#allocation8 + $0x80] sm:$0xff]
    %v220 = vld [vmem:[#allocation8 + $0x88] sm:$0xff]
    %v221 = vld [vmem:[#allocation8 + $0x90] sm:$0xff]
    %v222 = vld [vmem:[#allocation8 + $0x98] sm:$0xff]
    %v223 = vld [vmem:[#allocation8 + $0xa0] sm:$0xff]
    %v224 = vld [vmem:[#allocation8 + $0xa8] sm:$0xff]
    %v225 = vld [vmem:[#allocation8 + $0xb0] sm:$0xff]
    %v226 = vld [vmem:[#allocation8 + $0xb8] sm:$0xff]
    %v227 = vld [vmem:[#allocation8 + $0xc0] sm:$0xff]
    %v228 = vld [vmem:[#allocation8 + $0xc8] sm:$0xff]
    %v229 = vld [vmem:[#allocation8 + $0xd0] sm:$0xff]
    %v230 = vld [vmem:[#allocation8 + $0xd8] sm:$0xff]
    %v231 = vld [vmem:[#allocation8 + $0xe0] sm:$0xff]
    %v232 = vld [vmem:[#allocation8 + $0xe8] sm:$0xff]
    %v233 = vld [vmem:[#allocation8 + $0xf0] sm:$0xff]
    %v234 = vld [vmem:[#allocation8 + $0xf8] sm:$0xff]
    %v235 = vld [vmem:[%s4] sm:$0x1]
    %v237 = vlaneseq
    %v238 = vshrl.u32 %v237, 7
    %v239 = vsub.s32 0, %v238
    %v240 = vrot.slane %v235, %v239
    %242 = vmatprep.subr.mxu0 0.0
    %243 = vmatpush1.msra.mxu0 %v218
    %244 = vmatprep.subr.mxu0 0.0
    %245 = vmatpush1.msra.mxu0 %v217
    %246 = vmatprep.subr.mxu0 0.0
    %247 = vmatpush1.msra.mxu0 %v216
    %248 = vmatprep.subr.mxu0 0.0
    %249 = vmatpush1.msra.mxu0 %v215
    %250 = vmatprep.subr.mxu0 0.0
    %251 = vmatpush1.msra.mxu0 %v214
    %252 = vmatprep.subr.mxu0 0.0
    %253 = vmatpush1.msra.mxu0 %v213
    %254 = vmatprep.subr.mxu0 0.0
    %255 = vmatpush1.msra.mxu0 %v212
    %256 = vmatprep.subr.mxu0 0.0
    %257 = vmatpush1.msra.mxu0 %v211
    %258 = vmatprep.subr.mxu0 0.0
    %259 = vmatpush1.msra.mxu0 %v210
    %260 = vmatprep.subr.mxu0 0.0
    %261 = vmatpush1.msra.mxu0 %v209
    %262 = vmatprep.subr.mxu0 0.0
    %263 = vmatpush1.msra.mxu0 %v208
    %264 = vmatprep.subr.mxu0 0.0
    %265 = vmatpush1.msra.mxu0 %v207
    %266 = vmatprep.subr.mxu0 0.0
    %267 = vmatpush1.msra.mxu0 %v206
    %268 = vmatprep.subr.mxu0 0.0
    %269 = vmatpush1.msra.mxu0 %v205
    %270 = vmatprep.subr.mxu0 0.0
    %271 = vmatpush1.msra.mxu0 %v204
    %272 = vmatprep.subr.mxu0 0.0
    %273 = vmatpush1.msra.mxu0 %v203
    %274 = vmatprep.subr.mxu0 0.0
    %275 = vmatpush2.msra.mxu0 %v234
    %276 = vmatprep.subr.mxu0 0.0
    %277 = vmatpush2.msra.mxu0 %v233
    %278 = vmatprep.subr.mxu0 0.0
    %279 = vmatpush2.msra.mxu0 %v232
    %280 = vmatprep.subr.mxu0 0.0
    %281 = vmatpush2.msra.mxu0 %v231
    %282 = vmatprep.subr.mxu0 0.0
    %283 = vmatpush2.msra.mxu0 %v230
    %284 = vmatprep.subr.mxu0 0.0
    %285 = vmatpush2.msra.mxu0 %v229
    %286 = vmatprep.subr.mxu0 0.0
    %287 = vmatpush2.msra.mxu0 %v228
    %288 = vmatprep.subr.mxu0 0.0
    %289 = vmatpush2.msra.mxu0 %v227
    %290 = vmatprep.subr.mxu0 0.0
    %291 = vmatpush2.msra.mxu0 %v226
    %292 = vmatprep.subr.mxu0 0.0
    %293 = vmatpush2.msra.mxu0 %v225
    %294 = vmatprep.subr.mxu0 0.0
    %295 = vmatpush2.msra.mxu0 %v224
    %296 = vmatprep.subr.mxu0 0.0
    %297 = vmatpush2.msra.mxu0 %v223
    %298 = vmatprep.subr.mxu0 0.0
    %299 = vmatpush2.msra.mxu0 %v222
    %300 = vmatprep.subr.mxu0 0.0
    %301 = vmatpush2.msra.mxu0 %v221
    %302 = vmatprep.subr.mxu0 0.0
    %303 = vmatpush2.msra.mxu0 %v220
    %304 = vmatprep.subr.mxu0 0.0
    %305 = vmatpush2.msra.mxu0 %v219
    %306 = vmatprep.mubr.f32.mxu0 %v202
    %307 = vmatmul.mubr.f32.gmra.mxu0 %v201
    %v308 = vpop.f32.mrf.mxu0
    %v309 = vadd.f32 %v240, %v308
    %v310 = vpop.f32.mrf.mxu0
    %311 = vdwg.mxu0
    %v312 = vsub.f32 0.0, %v309
    %v313 = vmul.f32 %v312, 1.442695
    %v314 = vpow.pop %v313
    %v315 = vadd.f32 %v314, 1.0
    %v316 = vrcp.pop %v315
    %v317 = vmul.f32 %v309, %v316
    %318 = vst [vmem:[#allocation2 + $0x10] sm:$0xff] %v317
    %v319 = vld [vmem:[#allocation2] sm:$0xff]
    %v320 = vld [vmem:[#allocation2 + $0x8] sm:$0xff]
    %v321 = vld [vmem:[#allocation2 + $0x10] sm:$0xff]
    %v322 = vld [vmem:[#allocation9] sm:$0xff]
    %v323 = vld [vmem:[#allocation9 + $0x8] sm:$0xff]
    %v324 = vld [vmem:[#allocation9 + $0x10] sm:$0xff]
    %v325 = vld [vmem:[#allocation9 + $0x18] sm:$0xff]
    %v326 = vld [vmem:[#allocation9 + $0x20] sm:$0xff]
    %v327 = vld [vmem:[#allocation9 + $0x28] sm:$0xff]
    %v328 = vld [vmem:[#allocation9 + $0x30] sm:$0xff]
    %v329 = vld [vmem:[#allocation9 + $0x38] sm:$0xff]
    %v330 = vld [vmem:[#allocation9 + $0x40] sm:$0xff]
    %v331 = vld [vmem:[#allocation9 + $0x48] sm:$0xff]
    %v332 = vld [vmem:[#allocation9 + $0x50] sm:$0xff]
    %v333 = vld [vmem:[#allocation9 + $0x58] sm:$0xff]
    %v334 = vld [vmem:[#allocation9 + $0x60] sm:$0xff]
    %v335 = vld [vmem:[#allocation9 + $0x68] sm:$0xff]
    %v336 = vld [vmem:[#allocation9 + $0x70] sm:$0xff]
    %v337 = vld [vmem:[#allocation9 + $0x78] sm:$0xff]
    %v338 = vld [vmem:[#allocation9 + $0x80] sm:$0xff]
    %v339 = vld [vmem:[#allocation9 + $0x88] sm:$0xff]
    %v340 = vld [vmem:[#allocation9 + $0x90] sm:$0xff]
    %v341 = vld [vmem:[#allocation9 + $0x98] sm:$0xff]
    %v342 = vld [vmem:[#allocation9 + $0xa0] sm:$0xff]
    %v343 = vld [vmem:[#allocation9 + $0xa8] sm:$0xff]
    %v344 = vld [vmem:[#allocation9 + $0xb0] sm:$0xff]
    %v345 = vld [vmem:[#allocation9 + $0xb8] sm:$0xff]
    %v346 = vld [vmem:[#allocation9 + $0xc0] sm:$0xff]
    %v347 = vld [vmem:[#allocation9 + $0xc8] sm:$0xff]
    %v348 = vld [vmem:[#allocation9 + $0xd0] sm:$0xff]
    %v349 = vld [vmem:[#allocation9 + $0xd8] sm:$0xff]
    %v350 = vld [vmem:[#allocation9 + $0xe0] sm:$0xff]
    %v351 = vld [vmem:[#allocation9 + $0xe8] sm:$0xff]
    %v352 = vld [vmem:[#allocation9 + $0xf0] sm:$0xff]
    %v353 = vld [vmem:[#allocation9 + $0xf8] sm:$0xff]
    %v354 = vld [vmem:[#allocation9 + $0x100] sm:$0xff]
    %v355 = vld [vmem:[#allocation9 + $0x108] sm:$0xff]
    %v356 = vld [vmem:[#allocation9 + $0x110] sm:$0xff]
    %v357 = vld [vmem:[#allocation9 + $0x118] sm:$0xff]
    %v358 = vld [vmem:[#allocation9 + $0x120] sm:$0xff]
    %v359 = vld [vmem:[#allocation9 + $0x128] sm:$0xff]
    %v360 = vld [vmem:[#allocation9 + $0x130] sm:$0xff]
    %v361 = vld [vmem:[#allocation9 + $0x138] sm:$0xff]
    %v362 = vld [vmem:[#allocation9 + $0x140] sm:$0xff]
    %v363 = vld [vmem:[#allocation9 + $0x148] sm:$0xff]
    %v364 = vld [vmem:[#allocation9 + $0x150] sm:$0xff]
    %v365 = vld [vmem:[#allocation9 + $0x158] sm:$0xff]
    %v366 = vld [vmem:[#allocation9 + $0x160] sm:$0xff]
    %v367 = vld [vmem:[#allocation9 + $0x168] sm:$0xff]
    %v368 = vld [vmem:[#allocation9 + $0x170] sm:$0xff]
    %v369 = vld [vmem:[#allocation9 + $0x178] sm:$0xff]
    %v370 = vld [vmem:[%s6] sm:$0x1]
    %v372 = vlaneseq
    %v373 = vshrl.u32 %v372, 7
    %v374 = vsub.s32 0, %v373
    %v375 = vrot.slane %v370, %v374
    %377 = vmatprep.subr.mxu0 0.0
    %378 = vmatpush1.msra.mxu0 %v337
    %379 = vmatprep.subr.mxu0 0.0
    %380 = vmatpush1.msra.mxu0 %v336
    %381 = vmatprep.subr.mxu0 0.0
    %382 = vmatpush1.msra.mxu0 %v335
    %383 = vmatprep.subr.mxu0 0.0
    %384 = vmatpush1.msra.mxu0 %v334
    %385 = vmatprep.subr.mxu0 0.0
    %386 = vmatpush1.msra.mxu0 %v333
    %387 = vmatprep.subr.mxu0 0.0
    %388 = vmatpush1.msra.mxu0 %v332
    %389 = vmatprep.subr.mxu0 0.0
    %390 = vmatpush1.msra.mxu0 %v331
    %391 = vmatprep.subr.mxu0 0.0
    %392 = vmatpush1.msra.mxu0 %v330
    %393 = vmatprep.subr.mxu0 0.0
    %394 = vmatpush1.msra.mxu0 %v329
    %395 = vmatprep.subr.mxu0 0.0
    %396 = vmatpush1.msra.mxu0 %v328
    %397 = vmatprep.subr.mxu0 0.0
    %398 = vmatpush1.msra.mxu0 %v327
    %399 = vmatprep.subr.mxu0 0.0
    %400 = vmatpush1.msra.mxu0 %v326
    %401 = vmatprep.subr.mxu0 0.0
    %402 = vmatpush1.msra.mxu0 %v325
    %403 = vmatprep.subr.mxu0 0.0
    %404 = vmatpush1.msra.mxu0 %v324
    %405 = vmatprep.subr.mxu0 0.0
    %406 = vmatpush1.msra.mxu0 %v323
    %407 = vmatprep.subr.mxu0 0.0
    %408 = vmatpush1.msra.mxu0 %v322
    %409 = vmatprep.subr.mxu0 0.0
    %410 = vmatpush2.msra.mxu0 %v353
    %411 = vmatprep.subr.mxu0 0.0
    %412 = vmatpush2.msra.mxu0 %v352
    %413 = vmatprep.subr.mxu0 0.0
    %414 = vmatpush2.msra.mxu0 %v351
    %415 = vmatprep.subr.mxu0 0.0
    %416 = vmatpush2.msra.mxu0 %v350
    %417 = vmatprep.subr.mxu0 0.0
    %418 = vmatpush2.msra.mxu0 %v349
    %419 = vmatprep.subr.mxu0 0.0
    %420 = vmatpush2.msra.mxu0 %v348
    %421 = vmatprep.subr.mxu0 0.0
    %422 = vmatpush2.msra.mxu0 %v347
    %423 = vmatprep.subr.mxu0 0.0
    %424 = vmatpush2.msra.mxu0 %v346
    %425 = vmatprep.subr.mxu0 0.0
    %426 = vmatpush2.msra.mxu0 %v345
    %427 = vmatprep.subr.mxu0 0.0
    %428 = vmatpush2.msra.mxu0 %v344
    %429 = vmatprep.subr.mxu0 0.0
    %430 = vmatpush2.msra.mxu0 %v343
    %431 = vmatprep.subr.mxu0 0.0
    %432 = vmatpush2.msra.mxu0 %v342
    %433 = vmatprep.subr.mxu0 0.0
    %434 = vmatpush2.msra.mxu0 %v341
    %435 = vmatprep.subr.mxu0 0.0
    %436 = vmatpush2.msra.mxu0 %v340
    %437 = vmatprep.subr.mxu0 0.0
    %438 = vmatpush2.msra.mxu0 %v339
    %439 = vmatprep.subr.mxu0 0.0
    %440 = vmatpush2.msra.mxu0 %v338
    %441 = vmatprep.mubr.f32.mxu0 %v320
    %442 = vmatmul.mubr.f32.gmra.mxu0 %v319
    %v443 = vpop.f32.mrf.mxu0
    %v444 = vadd.f32 %v375, %v443
    %v445 = vpop.f32.mrf.mxu0
    %446 = vdwg.mxu0
    %447 = vmatprep.subr.mxu0 0.0
    %448 = vmatpush1.msra.mxu0 %v369
    %449 = vmatprep.subr.mxu0 0.0
    %450 = vmatpush1.msra.mxu0 %v368
    %451 = vmatprep.subr.mxu0 0.0
    %452 = vmatpush1.msra.mxu0 %v367
    %453 = vmatprep.subr.mxu0 0.0
    %454 = vmatpush1.msra.mxu0 %v366
    %455 = vmatprep.subr.mxu0 0.0
    %456 = vmatpush1.msra.mxu0 %v365
    %457 = vmatprep.subr.mxu0 0.0
    %458 = vmatpush1.msra.mxu0 %v364
    %459 = vmatprep.subr.mxu0 0.0
    %460 = vmatpush1.msra.mxu0 %v363
    %461 = vmatprep.subr.mxu0 0.0
    %462 = vmatpush1.msra.mxu0 %v362
    %463 = vmatprep.subr.mxu0 0.0
    %464 = vmatpush1.msra.mxu0 %v361
    %465 = vmatprep.subr.mxu0 0.0
    %466 = vmatpush1.msra.mxu0 %v360
    %467 = vmatprep.subr.mxu0 0.0
    %468 = vmatpush1.msra.mxu0 %v359
    %469 = vmatprep.subr.mxu0 0.0
    %470 = vmatpush1.msra.mxu0 %v358
    %471 = vmatprep.subr.mxu0 0.0
    %472 = vmatpush1.msra.mxu0 %v357
    %473 = vmatprep.subr.mxu0 0.0
    %474 = vmatpush1.msra.mxu0 %v356
    %475 = vmatprep.subr.mxu0 0.0
    %476 = vmatpush1.msra.mxu0 %v355
    %477 = vmatprep.subr.mxu0 0.0
    %478 = vmatpush1.msra.mxu0 %v354
    %479 = vmatprep.subr.mxu0 0.0
    %480 = vmatpush2.msra.mxu0 0.0
    %481 = vmatprep.subr.mxu0 0.0
    %482 = vmatpush2.msra.mxu0 0.0
    %483 = vmatprep.subr.mxu0 0.0
    %484 = vmatpush2.msra.mxu0 0.0
    %485 = vmatprep.subr.mxu0 0.0
    %486 = vmatpush2.msra.mxu0 0.0
    %487 = vmatprep.subr.mxu0 0.0
    %488 = vmatpush2.msra.mxu0 0.0
    %489 = vmatprep.subr.mxu0 0.0
    %490 = vmatpush2.msra.mxu0 0.0
    %491 = vmatprep.subr.mxu0 0.0
    %492 = vmatpush2.msra.mxu0 0.0
    %493 = vmatprep.subr.mxu0 0.0
    %494 = vmatpush2.msra.mxu0 0.0
    %495 = vmatprep.subr.mxu0 0.0
    %496 = vmatpush2.msra.mxu0 0.0
    %497 = vmatprep.subr.mxu0 0.0
    %498 = vmatpush2.msra.mxu0 0.0
    %499 = vmatprep.subr.mxu0 0.0
    %500 = vmatpush2.msra.mxu0 0.0
    %501 = vmatprep.subr.mxu0 0.0
    %502 = vmatpush2.msra.mxu0 0.0
    %503 = vmatprep.subr.mxu0 0.0
    %504 = vmatpush2.msra.mxu0 0.0
    %505 = vmatprep.subr.mxu0 0.0
    %506 = vmatpush2.msra.mxu0 0.0
    %507 = vmatprep.subr.mxu0 0.0
    %508 = vmatpush2.msra.mxu0 0.0
    %509 = vmatprep.subr.mxu0 0.0
    %510 = vmatpush2.msra.mxu0 0.0
    %511 = vmatprep.mubr.f32.mxu0 0.0
    %512 = vmatmul.mubr.f32.gmra.mxu0 %v321
    %v513 = vpop.f32.mrf.mxu0
    %v514 = vadd.f32 %v444, %v513
    %v515 = vpop.f32.mrf.mxu0
    %516 = vdwg.mxu0
    %v517 = vsub.f32 0.0, %v514
    %v518 = vmul.f32 %v517, 1.442695
    %v519 = vpow.pop %v518
    %v520 = vadd.f32 %v519, 1.0
    %v521 = vrcp.pop %v520
    %v522 = vmul.f32 %v514, %v521
    %523 = vst [vmem:[#allocation2 + $0x18] sm:$0xff] %v522
    %v524 = vld [vmem:[#allocation2] sm:$0xff]
    %v525 = vld [vmem:[#allocation2 + $0x8] sm:$0xff]
    %v526 = vld [vmem:[#allocation2 + $0x10] sm:$0xff]
    %v527 = vld [vmem:[#allocation2 + $0x18] sm:$0xff]
    %v528 = vld [vmem:[#allocation11] sm:$0xff]
    %v529 = vld [vmem:[#allocation11 + $0x8] sm:$0xff]
    %v530 = vld [vmem:[#allocation11 + $0x10] sm:$0xff]
    %v531 = vld [vmem:[#allocation11 + $0x18] sm:$0xff]
    %v532 = vld [vmem:[#allocation11 + $0x20] sm:$0xff]
    %v533 = vld [vmem:[#allocation11 + $0x28] sm:$0xff]
    %v534 = vld [vmem:[#allocation11 + $0x30] sm:$0xff]
    %v535 = vld [vmem:[#allocation11 + $0x38] sm:$0xff]
    %v536 = vld [vmem:[#allocation11 + $0x40] sm:$0xff]
    %v537 = vld [vmem:[#allocation11 + $0x48] sm:$0xff]
    %v538 = vld [vmem:[#allocation11 + $0x50] sm:$0xff]
    %v539 = vld [vmem:[#allocation11 + $0x58] sm:$0xff]
    %v540 = vld [vmem:[#allocation11 + $0x60] sm:$0xff]
    %v541 = vld [vmem:[#allocation11 + $0x68] sm:$0xff]
    %v542 = vld [vmem:[#allocation11 + $0x70] sm:$0xff]
    %v543 = vld [vmem:[#allocation11 + $0x78] sm:$0xff]
    %v544 = vld [vmem:[#allocation11 + $0x80] sm:$0xff]
    %v545 = vld [vmem:[#allocation11 + $0x88] sm:$0xff]
    %v546 = vld [vmem:[#allocation11 + $0x90] sm:$0xff]
    %v547 = vld [vmem:[#allocation11 + $0x98] sm:$0xff]
    %v548 = vld [vmem:[#allocation11 + $0xa0] sm:$0xff]
    %v549 = vld [vmem:[#allocation11 + $0xa8] sm:$0xff]
    %v550 = vld [vmem:[#allocation11 + $0xb0] sm:$0xff]
    %v551 = vld [vmem:[#allocation11 + $0xb8] sm:$0xff]
    %v552 = vld [vmem:[#allocation11 + $0xc0] sm:$0xff]
    %v553 = vld [vmem:[#allocation11 + $0xc8] sm:$0xff]
    %v554 = vld [vmem:[#allocation11 + $0xd0] sm:$0xff]
    %v555 = vld [vmem:[#allocation11 + $0xd8] sm:$0xff]
    %v556 = vld [vmem:[#allocation11 + $0xe0] sm:$0xff]
    %v557 = vld [vmem:[#allocation11 + $0xe8] sm:$0xff]
    %v558 = vld [vmem:[#allocation11 + $0xf0] sm:$0xff]
    %v559 = vld [vmem:[#allocation11 + $0xf8] sm:$0xff]
    %v560 = vld [vmem:[#allocation11 + $0x100] sm:$0xff]
    %v561 = vld [vmem:[#allocation11 + $0x108] sm:$0xff]
    %v562 = vld [vmem:[#allocation11 + $0x110] sm:$0xff]
    %v563 = vld [vmem:[#allocation11 + $0x118] sm:$0xff]
    %v564 = vld [vmem:[#allocation11 + $0x120] sm:$0xff]
    %v565 = vld [vmem:[#allocation11 + $0x128] sm:$0xff]
    %v566 = vld [vmem:[#allocation11 + $0x130] sm:$0xff]
    %v567 = vld [vmem:[#allocation11 + $0x138] sm:$0xff]
    %v568 = vld [vmem:[#allocation11 + $0x140] sm:$0xff]
    %v569 = vld [vmem:[#allocation11 + $0x148] sm:$0xff]
    %v570 = vld [vmem:[#allocation11 + $0x150] sm:$0xff]
    %v571 = vld [vmem:[#allocation11 + $0x158] sm:$0xff]
    %v572 = vld [vmem:[#allocation11 + $0x160] sm:$0xff]
    %v573 = vld [vmem:[#allocation11 + $0x168] sm:$0xff]
    %v574 = vld [vmem:[#allocation11 + $0x170] sm:$0xff]
    %v575 = vld [vmem:[#allocation11 + $0x178] sm:$0xff]
    %v576 = vld [vmem:[#allocation11 + $0x180] sm:$0xff]
    %v577 = vld [vmem:[#allocation11 + $0x188] sm:$0xff]
    %v578 = vld [vmem:[#allocation11 + $0x190] sm:$0xff]
    %v579 = vld [vmem:[#allocation11 + $0x198] sm:$0xff]
    %v580 = vld [vmem:[#allocation11 + $0x1a0] sm:$0xff]
    %v581 = vld [vmem:[#allocation11 + $0x1a8] sm:$0xff]
    %v582 = vld [vmem:[#allocation11 + $0x1b0] sm:$0xff]
    %v583 = vld [vmem:[#allocation11 + $0x1b8] sm:$0xff]
    %v584 = vld [vmem:[#allocation11 + $0x1c0] sm:$0xff]
    %v585 = vld [vmem:[#allocation11 + $0x1c8] sm:$0xff]
    %v586 = vld [vmem:[#allocation11 + $0x1d0] sm:$0xff]
    %v587 = vld [vmem:[#allocation11 + $0x1d8] sm:$0xff]
    %v588 = vld [vmem:[#allocation11 + $0x1e0] sm:$0xff]
    %v589 = vld [vmem:[#allocation11 + $0x1e8] sm:$0xff]
    %v590 = vld [vmem:[#allocation11 + $0x1f0] sm:$0xff]
    %v591 = vld [vmem:[#allocation11 + $0x1f8] sm:$0xff]
    %v592 = vld [vmem:[%s8] sm:$0x1]
    %v594 = vlaneseq
    %v595 = vshrl.u32 %v594, 7
    %v596 = vsub.s32 0, %v595
    %v597 = vrot.slane %v592, %v596
    %599 = vmatprep.subr.mxu0 0.0
    %600 = vmatpush1.msra.mxu0 %v543
    %601 = vmatprep.subr.mxu0 0.0
    %602 = vmatpush1.msra.mxu0 %v542
    %603 = vmatprep.subr.mxu0 0.0
    %604 = vmatpush1.msra.mxu0 %v541
    %605 = vmatprep.subr.mxu0 0.0
    %606 = vmatpush1.msra.mxu0 %v540
    %607 = vmatprep.subr.mxu0 0.0
    %608 = vmatpush1.msra.mxu0 %v539
    %609 = vmatprep.subr.mxu0 0.0
    %610 = vmatpush1.msra.mxu0 %v538
    %611 = vmatprep.subr.mxu0 0.0
    %612 = vmatpush1.msra.mxu0 %v537
    %613 = vmatprep.subr.mxu0 0.0
    %614 = vmatpush1.msra.mxu0 %v536
    %615 = vmatprep.subr.mxu0 0.0
    %616 = vmatpush1.msra.mxu0 %v535
    %617 = vmatprep.subr.mxu0 0.0
    %618 = vmatpush1.msra.mxu0 %v534
    %619 = vmatprep.subr.mxu0 0.0
    %620 = vmatpush1.msra.mxu0 %v533
    %621 = vmatprep.subr.mxu0 0.0
    %622 = vmatpush1.msra.mxu0 %v532
    %623 = vmatprep.subr.mxu0 0.0
    %624 = vmatpush1.msra.mxu0 %v531
    %625 = vmatprep.subr.mxu0 0.0
    %626 = vmatpush1.msra.mxu0 %v530
    %627 = vmatprep.subr.mxu0 0.0
    %628 = vmatpush1.msra.mxu0 %v529
    %629 = vmatprep.subr.mxu0 0.0
    %630 = vmatpush1.msra.mxu0 %v528
    %631 = vmatprep.subr.mxu0 0.0
    %632 = vmatpush2.msra.mxu0 %v559
    %633 = vmatprep.subr.mxu0 0.0
    %634 = vmatpush2.msra.mxu0 %v558
    %635 = vmatprep.subr.mxu0 0.0
    %636 = vmatpush2.msra.mxu0 %v557
    %637 = vmatprep.subr.mxu0 0.0
    %638 = vmatpush2.msra.mxu0 %v556
    %639 = vmatprep.subr.mxu0 0.0
    %640 = vmatpush2.msra.mxu0 %v555
    %641 = vmatprep.subr.mxu0 0.0
    %642 = vmatpush2.msra.mxu0 %v554
    %643 = vmatprep.subr.mxu0 0.0
    %644 = vmatpush2.msra.mxu0 %v553
    %645 = vmatprep.subr.mxu0 0.0
    %646 = vmatpush2.msra.mxu0 %v552
    %647 = vmatprep.subr.mxu0 0.0
    %648 = vmatpush2.msra.mxu0 %v551
    %649 = vmatprep.subr.mxu0 0.0
    %650 = vmatpush2.msra.mxu0 %v550
    %651 = vmatprep.subr.mxu0 0.0
    %652 = vmatpush2.msra.mxu0 %v549
    %653 = vmatprep.subr.mxu0 0.0
    %654 = vmatpush2.msra.mxu0 %v548
    %655 = vmatprep.subr.mxu0 0.0
    %656 = vmatpush2.msra.mxu0 %v547
    %657 = vmatprep.subr.mxu0 0.0
    %658 = vmatpush2.msra.mxu0 %v546
    %659 = vmatprep.subr.mxu0 0.0
    %660 = vmatpush2.msra.mxu0 %v545
    %661 = vmatprep.subr.mxu0 0.0
    %662 = vmatpush2.msra.mxu0 %v544
    %663 = vmatprep.mubr.f32.mxu0 %v525
    %664 = vmatmul.mubr.f32.gmra.mxu0 %v524
    %v665 = vpop.f32.mrf.mxu0
    %v666 = vadd.f32 %v597, %v665
    %v667 = vpop.f32.mrf.mxu0
    %668 = vdwg.mxu0
    %669 = vmatprep.subr.mxu0 0.0
    %670 = vmatpush1.msra.mxu0 %v575
    %671 = vmatprep.subr.mxu0 0.0
    %672 = vmatpush1.msra.mxu0 %v574
    %673 = vmatprep.subr.mxu0 0.0
    %674 = vmatpush1.msra.mxu0 %v573
    %675 = vmatprep.subr.mxu0 0.0
    %676 = vmatpush1.msra.mxu0 %v572
    %677 = vmatprep.subr.mxu0 0.0
    %678 = vmatpush1.msra.mxu0 %v571
    %679 = vmatprep.subr.mxu0 0.0
    %680 = vmatpush1.msra.mxu0 %v570
    %681 = vmatprep.subr.mxu0 0.0
    %682 = vmatpush1.msra.mxu0 %v569
    %683 = vmatprep.subr.mxu0 0.0
    %684 = vmatpush1.msra.mxu0 %v568
    %685 = vmatprep.subr.mxu0 0.0
    %686 = vmatpush1.msra.mxu0 %v567
    %687 = vmatprep.subr.mxu0 0.0
    %688 = vmatpush1.msra.mxu0 %v566
    %689 = vmatprep.subr.mxu0 0.0
    %690 = vmatpush1.msra.mxu0 %v565
    %691 = vmatprep.subr.mxu0 0.0
    %692 = vmatpush1.msra.mxu0 %v564
    %693 = vmatprep.subr.mxu0 0.0
    %694 = vmatpush1.msra.mxu0 %v563
    %695 = vmatprep.subr.mxu0 0.0
    %696 = vmatpush1.msra.mxu0 %v562
    %697 = vmatprep.subr.mxu0 0.0
    %698 = vmatpush1.msra.mxu0 %v561
    %699 = vmatprep.subr.mxu0 0.0
    %700 = vmatpush1.msra.mxu0 %v560
    %701 = vmatprep.subr.mxu0 0.0
    %702 = vmatpush2.msra.mxu0 %v591
    %703 = vmatprep.subr.mxu0 0.0
    %704 = vmatpush2.msra.mxu0 %v590
    %705 = vmatprep.subr.mxu0 0.0
    %706 = vmatpush2.msra.mxu0 %v589
    %707 = vmatprep.subr.mxu0 0.0
    %708 = vmatpush2.msra.mxu0 %v588
    %709 = vmatprep.subr.mxu0 0.0
    %710 = vmatpush2.msra.mxu0 %v587
    %711 = vmatprep.subr.mxu0 0.0
    %712 = vmatpush2.msra.mxu0 %v586
    %713 = vmatprep.subr.mxu0 0.0
    %714 = vmatpush2.msra.mxu0 %v585
    %715 = vmatprep.subr.mxu0 0.0
    %716 = vmatpush2.msra.mxu0 %v584
    %717 = vmatprep.subr.mxu0 0.0
    %718 = vmatpush2.msra.mxu0 %v583
    %719 = vmatprep.subr.mxu0 0.0
    %720 = vmatpush2.msra.mxu0 %v582
    %721 = vmatprep.subr.mxu0 0.0
    %722 = vmatpush2.msra.mxu0 %v581
    %723 = vmatprep.subr.mxu0 0.0
    %724 = vmatpush2.msra.mxu0 %v580
    %725 = vmatprep.subr.mxu0 0.0
    %726 = vmatpush2.msra.mxu0 %v579
    %727 = vmatprep.subr.mxu0 0.0
    %728 = vmatpush2.msra.mxu0 %v578
    %729 = vmatprep.subr.mxu0 0.0
    %730 = vmatpush2.msra.mxu0 %v577
    %731 = vmatprep.subr.mxu0 0.0
    %732 = vmatpush2.msra.mxu0 %v576
    %733 = vmatprep.mubr.f32.mxu0 %v527
    %734 = vmatmul.mubr.f32.gmra.mxu0 %v526
    %v735 = vpop.f32.mrf.mxu0
    %v736 = vadd.f32 %v666, %v735
    %v737 = vpop.f32.mrf.mxu0
    %738 = vdwg.mxu0
    %739 = vst [vmem:[#allocation12] sm:$0xff] %v736
    // Predicated region
    $region58: #{tpu_custom_call.1} parent=1 // pred_check
      _
    $region59: #{tpu_custom_call.1} parent=1 // pred_check_branch
      %741 = sbr.rel (0) target = $region61
    $region60: #{tpu_custom_call.1} parent=1 // pred_region
      %s743 = ssub.s32 128, 128
      %744 = vsyncadd [#allocation5], %s743
      %s746 = sshll.u32 [#allocation12], 4
      %s747 = int_to_ptr.vmem [resolvable:$true] %s746
      %749 = dma.vmem_to_hbm [thread:$0]  %s747, 128, %s9, [#allocation5]
    $region61: #{tpu_custom_call.1} parent=1 // pred_fallthru
      _
    // Predicated region
    $region62: #{tpu_custom_call.1} parent=1 // pred_check
      _
    $region63: #{tpu_custom_call.1} parent=1 // pred_check_branch
      %751 = sbr.rel (0) target = $region65
    $region64: #{tpu_custom_call.1} parent=1 // pred_region
      %752 = dma.done [#allocation5], 128
    $region65: #{tpu_custom_call.1} parent=1 // pred_fallthru
      _
    %753 = vsyncpa [#allocation4], 1
    %754 = vsyncpa [#allocation7], 1
    %755 = vsyncpa [#allocation10], 1
    %756 = vsyncpa [#allocation5], 1

</llo_original>
